<compile_context>
chip_gen: v7x
topology: tpu7x:2x2x1
jax: 0.10.0
libtpu: 0.0.40
codegen_flags: <defaults>
</compile_context>

<pallas_src>
import functools

import jax
import jax.numpy as jnp
from jax.experimental import pallas as pl
from jax.experimental.pallas import tpu as pltpu

_EPS = 1e-5
_INV_SQRT2 = 0.7071067811865476
_LANE = 128
_VMEM_LIMIT = 64 * 1024 * 1024


def _round_up(x, m):
    return (x + m - 1) // m * m


def _gelu_exact(x):
    # PyTorch nn.GELU() default (approximate='none'): 0.5*x*(1+erf(x/sqrt(2)))
    return 0.5 * x * (1.0 + jax.lax.erf(x * _INV_SQRT2))


# ----------------------------------------------------------------------------
# Kernel 1: conv1 (k=3, s=1, p=1) as one im2col matmul + BN1 batch statistics.
# ----------------------------------------------------------------------------
def _conv1_stats_kernel(x_ref, w_ref, y_ref, st_ref, acc_ref):
    b = pl.program_id(0)
    L = y_ref.shape[0]
    # im2col: 3 shifted L-windows of the padded input, concatenated on lanes.
    im = jnp.concatenate([x_ref[pl.ds(k, L), :] for k in range(3)], axis=-1)
    y = jnp.dot(im, w_ref[...], preferred_element_type=jnp.float32)
    y_ref[...] = y
    part = jnp.concatenate(
        [jnp.sum(y, axis=0, keepdims=True),
         jnp.sum(y * y, axis=0, keepdims=True)], axis=0)

    @pl.when(b == 0)
    def _():
        acc_ref[...] = part

    @pl.when(b > 0)
    def _():
        acc_ref[...] = acc_ref[...] + part

    @pl.when(b == pl.num_programs(0) - 1)
    def _():
        st_ref[...] = acc_ref[...]


# ----------------------------------------------------------------------------
# Kernel 2: BN1 normalize (fused FMA) + GELU + residual add, then conv2
# (k=4, s=2, p=1) via strided in-VMEM taps + BN2 batch statistics.
# ----------------------------------------------------------------------------
def _bn1_res_conv2_kernel(*refs, identity_res):
    if identity_res:
        y1_ref, x_ref, sb_ref, w2_ref, y2_ref, st_ref, acc_ref, hp_ref = refs
        wr_ref = br_ref = None
    else:
        (y1_ref, x_ref, sb_ref, wr_ref, br_ref, w2_ref,
         y2_ref, st_ref, acc_ref, hp_ref) = refs
    b = pl.program_id(0)
    L, C = y1_ref.shape
    Lo = y2_ref.shape[0]

    # BN1 as a single per-element FMA, then exact GELU.
    h = _gelu_exact(y1_ref[...] * sb_ref[0:1, :] + sb_ref[1:2, :])

    # Residual branch: plain add for identity, 1x1 conv otherwise.
    xs = x_ref[pl.ds(1, L), :]
    if identity_res:
        h = h + xs
    else:
        h = h + jnp.dot(xs, wr_ref[...],
                        preferred_element_type=jnp.float32) + br_ref[...]

    # conv2: zero-pad h along L inside a VMEM scratch, then gather the four
    # stride-2 taps with strided ref loads and do one im2col matmul.
    zrow = jnp.zeros((1, C), jnp.float32)
    hp_ref[pl.ds(0, 1), :] = zrow
    hp_ref[pl.ds(L + 1, 1), :] = zrow
    hp_ref[pl.ds(1, L), :] = h
    im = jnp.concatenate([hp_ref[pl.ds(k, Lo, 2), :] for k in range(4)], axis=-1)
    y2 = jnp.dot(im, w2_ref[...], preferred_element_type=jnp.float32)
    y2_ref[...] = y2

    part = jnp.concatenate(
        [jnp.sum(y2, axis=0, keepdims=True),
         jnp.sum(y2 * y2, axis=0, keepdims=True)], axis=0)

    @pl.when(b == 0)
    def _():
        acc_ref[...] = part

    @pl.when(b > 0)
    def _():
        acc_ref[...] = acc_ref[...] + part

    @pl.when(b == pl.num_programs(0) - 1)
    def _():
        st_ref[...] = acc_ref[...]


# ----------------------------------------------------------------------------
# Kernel 3: BN2 normalize (fused FMA) + GELU. Pure elementwise -> "parallel".
# ----------------------------------------------------------------------------
def _bn_gelu_kernel(y_ref, sb_ref, o_ref):
    o_ref[...] = _gelu_exact(y_ref[...] * sb_ref[0:1, :] + sb_ref[1:2, :])


def _scale_shift(stats, gamma_p, beta_p, count):
    mean = stats[0] / count
    var = jnp.maximum(stats[1] / count - mean * mean, 0.0)   # biased variance
    scale = gamma_p * jax.lax.rsqrt(var + _EPS)
    shift = beta_p - mean * scale
    return jnp.stack([scale, shift], axis=0)                  # (2, Cp)


@jax.jit
def conv_block_forward(x, params):
    """x: (B, Cin, L) in PyTorch NCL layout. Returns (B, Cout, L // 2)."""
    B, Cin, L = x.shape
    Cout = params["w1"].shape[2]
    Ci = _round_up(Cin, _LANE)
    Co = _round_up(Cout, _LANE)
    Lo = (L + 2 - 4) // 2 + 1
    identity_res = "wr" not in params
    f32 = jnp.float32

    # NCL -> NLC, pad L by 1 each side (conv1 padding) and channels to lane mult.
    x_p = jnp.pad(jnp.transpose(x, (0, 2, 1)).astype(f32),
                  ((0, 0), (1, 1), (0, Ci - Cin)))

    # im2col weights (zero-padded channels keep padded outputs exactly zero).
    w1 = jnp.zeros((3, Ci, Co), f32).at[:, :Cin, :Cout].set(
        params["w1"]).reshape(3 * Ci, Co)
    w2 = jnp.zeros((4, Co, Co), f32).at[:, :Cout, :Cout].set(
        params["w2"]).reshape(4 * Co, Co)
    g1 = jnp.zeros((Co,), f32).at[:Cout].set(params["g1"].reshape(-1))
    b1 = jnp.zeros((Co,), f32).at[:Cout].set(params["b1"].reshape(-1))
    g2 = jnp.zeros((Co,), f32).at[:Cout].set(params["g2"].reshape(-1))
    b2 = jnp.zeros((Co,), f32).at[:Cout].set(params["b2"].reshape(-1))

    cp_seq = pltpu.CompilerParams(dimension_semantics=("arbitrary",),
                                  vmem_limit_bytes=_VMEM_LIMIT)
    cp_par = pltpu.CompilerParams(dimension_semantics=("parallel",),
                                  vmem_limit_bytes=_VMEM_LIMIT)

    def full(shape):
        return pl.BlockSpec(shape, lambda b: (0,) * len(shape))

    def per_b(shape):
        return pl.BlockSpec((None,) + shape, lambda b: (b, 0, 0))

    # Pass 1: conv1 + BN1 stats.
    y1, st1 = pl.pallas_call(
        _conv1_stats_kernel,
        grid=(B,),
        in_specs=[per_b((L + 2, Ci)), full((3 * Ci, Co))],
        out_specs=[per_b((L, Co)), full((2, Co))],
        out_shape=(jax.ShapeDtypeStruct((B, L, Co), f32),
                   jax.ShapeDtypeStruct((2, Co), f32)),
        scratch_shapes=[pltpu.VMEM((2, Co), f32)],
        compiler_params=cp_seq,
    )(x_p, w1)
    sb1 = _scale_shift(st1, g1, b1, B * L)

    # Pass 2: BN1+GELU+residual, conv2, BN2 stats.
    ins = [y1, x_p, sb1]
    in_specs = [per_b((L, Co)), per_b((L + 2, Ci)), full((2, Co))]
    if not identity_res:
        wr = jnp.zeros((Ci, Co), f32).at[:Cin, :Cout].set(params["wr"])
        br = jnp.zeros((1, Co), f32).at[0, :Cout].set(params["br"].reshape(-1))
        ins += [wr, br]
        in_specs += [full((Ci, Co)), full((1, Co))]
    ins.append(w2)
    in_specs.append(full((4 * Co, Co)))

    y2, st2 = pl.pallas_call(
        functools.partial(_bn1_res_conv2_kernel, identity_res=identity_res),
        grid=(B,),
        in_specs=in_specs,
        out_specs=[per_b((Lo, Co)), full((2, Co))],
        out_shape=(jax.ShapeDtypeStruct((B, Lo, Co), f32),
                   jax.ShapeDtypeStruct((2, Co), f32)),
        scratch_shapes=[pltpu.VMEM((2, Co), f32),
                        pltpu.VMEM((L + 2, Co), f32)],
        compiler_params=cp_seq,
    )(*ins)
    sb2 = _scale_shift(st2, g2, b2, B * Lo)

    # Pass 3: BN2 normalize + GELU.
    out_nlc = pl.pallas_call(
        _bn_gelu_kernel,
        grid=(B,),
        in_specs=[per_b((Lo, Co)), full((2, Co))],
        out_specs=per_b((Lo, Co)),
        out_shape=jax.ShapeDtypeStruct((B, Lo, Co), f32),
        compiler_params=cp_par,
    )(y2, sb2)

    return jnp.transpose(out_nlc[:, :, :Cout], (0, 2, 1))


def init_params(key, in_chann, out_chann):
    ks = jax.random.split(key, 8)
    p = {
        "w1": 0.2 * jax.random.normal(ks[0], (3, in_chann, out_chann), jnp.float32),
        "g1": 1.0 + 0.1 * jax.random.normal(ks[1], (out_chann,), jnp.float32),
        "b1": 0.1 * jax.random.normal(ks[2], (out_chann,), jnp.float32),
        "w2": 0.2 * jax.random.normal(ks[3], (4, out_chann, out_chann), jnp.float32),
        "g2": 1.0 + 0.1 * jax.random.normal(ks[4], (out_chann,), jnp.float32),
        "b2": 0.1 * jax.random.normal(ks[5], (out_chann,), jnp.float32),
    }
    if in_chann != out_chann:
        # residual_layer = nn.Conv1d(in, out, kernel_size=1) with bias.
        p["wr"] = 0.2 * jax.random.normal(ks[6], (in_chann, out_chann), jnp.float32)
        p["br"] = 0.1 * jax.random.normal(ks[7], (out_chann,), jnp.float32)
    # else: residual_layer = nn.Identity()
    return p


def reference_forward(x, params):
    """Pure-JAX reference matching PyTorch training-mode forward semantics."""
    def conv1d(x_nlc, w_kio, stride, pad):
        K = w_kio.shape[0]
        L = x_nlc.shape[1]
        xp = jnp.pad(x_nlc, ((0, 0), (pad, pad), (0, 0)))
        Lo = (L + 2 * pad - K) // stride + 1
        out = 0.0
        for k in range(K):
            out = out + jnp.einsum(
                "blc,cd->bld",
                xp[:, k:k + stride * (Lo - 1) + 1:stride, :], w_kio[k])
        return out

    def bn_gelu(y, g, b):
        mu = jnp.mean(y, axis=(0, 1), keepdims=True)
        var = jnp.mean((y - mu) ** 2, axis=(0, 1), keepdims=True)
        y = (y - mu) / jnp.sqrt(var + _EPS) * g.reshape(1, 1, -1) + b.reshape(1, 1, -1)
        return 0.5 * y * (1.0 + jax.lax.erf(y * _INV_SQRT2))

    x_nlc = jnp.transpose(x, (0, 2, 1))
    h = bn_gelu(conv1d(x_nlc, params["w1"], 1, 1), params["g1"], params["b1"])
    if "wr" in params:
        res = jnp.einsum("blc,cd->bld", x_nlc, params["wr"]) + params["br"].reshape(1, 1, -1)
    else:
        res = x_nlc
    h = h + res
    out = bn_gelu(conv1d(h, params["w2"], 2, 1), params["g2"], params["b2"])
    return jnp.transpose(out, (0, 2, 1))


if __name__ == "__main__":
    key = jax.random.PRNGKey(0)
    # Case 1 exercises the 1x1-conv residual, case 2 the identity residual.
    for (B, Cin, Cout, L) in [(2, 4, 8, 16), (2, 8, 8, 16)]:
        kx, kp = jax.random.split(jax.random.fold_in(key, Cin * 100 + Cout))
        x = jax.random.normal(kx, (B, Cin, L), jnp.float32)
        params = init_params(kp, Cin, Cout)

        out = jax.block_until_ready(conv_block_forward(x, params))
        ref = jax.block_until_ready(reference_forward(x, params))

        assert out.shape == (B, Cout, L // 2), out.shape
        err = float(jnp.max(jnp.abs(out - ref)))
        assert err < 1e-3, err
    print("KERNEL_OK")
</pallas_src>

<mosaic_0001>
module attributes {stable_mosaic.version = 11 : i64} {
  func.func @_conv1_stats_kernel(%arg0: i32, %arg1: memref<1x18x128xf32, #tpu.memory_space<vmem>>, %arg2: memref<384x128xf32, #tpu.memory_space<vmem>>, %arg3: memref<1x16x128xf32, #tpu.memory_space<vmem>>, %arg4: memref<2x128xf32, #tpu.memory_space<vmem>>, %arg5: memref<2x128xf32, #tpu.memory_space<vmem>>) attributes {dimension_semantics = [#tpu.dimension_semantics<arbitrary>], iteration_bounds = array<i64: 2>, scalar_prefetch = 0 : i64, scratch_operands = 1 : i64, tpu.core_type = #tpu.core_type<tc>, window_params = [{transform_indices = @transform_0, window_bounds = array<i64: 1, 18, 128>}, {pipeline_mode = #tpu.pipeline_mode<synchronous>, transform_indices = @transform_1, window_bounds = array<i64: 384, 128>}, {transform_indices = @transform_2, window_bounds = array<i64: 1, 16, 128>}, {pipeline_mode = #tpu.pipeline_mode<synchronous>, transform_indices = @transform_3, window_bounds = array<i64: 2, 128>}]} {
    %c0 = arith.constant 0 : index
    %c0_0 = arith.constant 0 : index
    %c0_1 = arith.constant 0 : index
    %0 = vector.load %arg1[%c0, %c0_0, %c0_1] : memref<1x18x128xf32, #tpu.memory_space<vmem>>, vector<1x16x128xf32>
    %1 = vector.shape_cast %0 : vector<1x16x128xf32> to vector<16x128xf32>
    %c0_2 = arith.constant 0 : index
    %c1 = arith.constant 1 : index
    %c0_3 = arith.constant 0 : index
    %2 = vector.load %arg1[%c0_2, %c1, %c0_3] : memref<1x18x128xf32, #tpu.memory_space<vmem>>, vector<1x16x128xf32>
    %3 = vector.shape_cast %2 : vector<1x16x128xf32> to vector<16x128xf32>
    %c0_4 = arith.constant 0 : index
    %c2 = arith.constant 2 : index
    %c0_5 = arith.constant 0 : index
    %4 = vector.load %arg1[%c0_4, %c2, %c0_5] : memref<1x18x128xf32, #tpu.memory_space<vmem>>, vector<1x16x128xf32>
    %5 = vector.shape_cast %4 : vector<1x16x128xf32> to vector<16x128xf32>
    %6 = tpu.concatenate %1, %3, %5 in 1 : vector<16x128xf32>, vector<16x128xf32>, vector<16x128xf32> -> vector<16x384xf32>
    %c0_6 = arith.constant 0 : index
    %c0_7 = arith.constant 0 : index
    %7 = vector.load %arg2[%c0_6, %c0_7] : memref<384x128xf32, #tpu.memory_space<vmem>>, vector<384x128xf32>
    %cst = arith.constant dense<0.000000e+00> : vector<16x128xf32>
    %8 = tpu.matmul %6, %7, %cst {dimension_numbers = #tpu.dot_dimension_numbers<[1], [0], [0], [1], [0, 0, 1, 1], [], []>} : vector<16x384xf32>, vector<384x128xf32>, vector<16x128xf32> -> vector<16x128xf32>
    %c0_8 = arith.constant 0 : index
    %c0_9 = arith.constant 0 : index
    %c0_10 = arith.constant 0 : index
    %9 = vector.load %arg3[%c0_8, %c0_9, %c0_10] : memref<1x16x128xf32, #tpu.memory_space<vmem>>, vector<1x16x128xf32>
    %10 = vector.shape_cast %9 : vector<1x16x128xf32> to vector<16x128xf32>
    %11 = vector.shape_cast %8 : vector<16x128xf32> to vector<1x16x128xf32>
    tpu.vector_store %arg3[%c0_8, %c0_9, %c0_10], %11 {strides = array<i32>} : memref<1x16x128xf32, #tpu.memory_space<vmem>>, vector<1x16x128xf32>,
    %cst_11 = arith.constant dense<0.000000e+00> : vector<128xf32>
    %12 = vector.multi_reduction <add>, %8, %cst_11 [0] : vector<16x128xf32> to vector<128xf32>
    %13 = vector.shape_cast %12 : vector<128xf32> to vector<1x128xf32>
    %14 = arith.mulf %8, %8 : vector<16x128xf32>
    %cst_12 = arith.constant dense<0.000000e+00> : vector<128xf32>
    %15 = vector.multi_reduction <add>, %14, %cst_12 [0] : vector<16x128xf32> to vector<128xf32>
    %16 = vector.shape_cast %15 : vector<128xf32> to vector<1x128xf32>
    %17 = tpu.concatenate %13, %16 in 0 : vector<1x128xf32>, vector<1x128xf32> -> vector<2x128xf32>
    %c0_i32 = arith.constant 0 : i32
    %18 = arith.cmpi eq, %arg0, %c0_i32 : i32
    %19 = arith.extui %18 : i1 to i32
    %c0_i32_13 = arith.constant 0 : i32
    %20 = arith.cmpi ne, %19, %c0_i32_13 : i32
    scf.if %20 {
      %c0_17 = arith.constant 0 : index
      %c0_18 = arith.constant 0 : index
      %27 = vector.load %arg5[%c0_17, %c0_18] : memref<2x128xf32, #tpu.memory_space<vmem>>, vector<2x128xf32>
      tpu.vector_store %arg5[%c0_17, %c0_18], %17 {strides = array<i32>} : memref<2x128xf32, #tpu.memory_space<vmem>>, vector<2x128xf32>,
    } else {
    }
    %c0_i32_14 = arith.constant 0 : i32
    %21 = arith.cmpi sgt, %arg0, %c0_i32_14 : i32
    %22 = arith.extui %21 : i1 to i32
    %c0_i32_15 = arith.constant 0 : i32
    %23 = arith.cmpi ne, %22, %c0_i32_15 : i32
    scf.if %23 {
      %c0_17 = arith.constant 0 : index
      %c0_18 = arith.constant 0 : index
      %27 = vector.load %arg5[%c0_17, %c0_18] : memref<2x128xf32, #tpu.memory_space<vmem>>, vector<2x128xf32>
      %28 = arith.addf %27, %17 : vector<2x128xf32>
      %c0_19 = arith.constant 0 : index
      %c0_20 = arith.constant 0 : index
      %29 = vector.load %arg5[%c0_19, %c0_20] : memref<2x128xf32, #tpu.memory_space<vmem>>, vector<2x128xf32>
      tpu.vector_store %arg5[%c0_19, %c0_20], %28 {strides = array<i32>} : memref<2x128xf32, #tpu.memory_space<vmem>>, vector<2x128xf32>,
    } else {
    }
    %c1_i32 = arith.constant 1 : i32
    %24 = arith.cmpi eq, %arg0, %c1_i32 : i32
    %25 = arith.extui %24 : i1 to i32
    %c0_i32_16 = arith.constant 0 : i32
    %26 = arith.cmpi ne, %25, %c0_i32_16 : i32
    scf.if %26 {
      %c0_17 = arith.constant 0 : index
      %c0_18 = arith.constant 0 : index
      %27 = vector.load %arg5[%c0_17, %c0_18] : memref<2x128xf32, #tpu.memory_space<vmem>>, vector<2x128xf32>
      %c0_19 = arith.constant 0 : index
      %c0_20 = arith.constant 0 : index
      %28 = vector.load %arg4[%c0_19, %c0_20] : memref<2x128xf32, #tpu.memory_space<vmem>>, vector<2x128xf32>
      tpu.vector_store %arg4[%c0_19, %c0_20], %27 {strides = array<i32>} : memref<2x128xf32, #tpu.memory_space<vmem>>, vector<2x128xf32>,
    } else {
    }
    return
  }
  func.func @transform_0(%arg0: i32) -> (i32, i32, i32) {
    %c0_i32 = arith.constant 0 : i32
    %c0_i32_0 = arith.constant 0 : i32
    %c0_i32_1 = arith.constant 0 : i32
    return %arg0, %c0_i32, %c0_i32_0 : i32, i32, i32
  }
  func.func @transform_1(%arg0: i32) -> (i32, i32) {
    %c0_i32 = arith.constant 0 : i32
    %c0_i32_0 = arith.constant 0 : i32
    %c0_i32_1 = arith.constant 0 : i32
    return %c0_i32, %c0_i32_0 : i32, i32
  }
  func.func @transform_2(%arg0: i32) -> (i32, i32, i32) {
    %c0_i32 = arith.constant 0 : i32
    %c0_i32_0 = arith.constant 0 : i32
    %c0_i32_1 = arith.constant 0 : i32
    return %arg0, %c0_i32, %c0_i32_0 : i32, i32, i32
  }
  func.func @transform_3(%arg0: i32) -> (i32, i32) {
    %c0_i32 = arith.constant 0 : i32
    %c0_i32_0 = arith.constant 0 : i32
    %c0_i32_1 = arith.constant 0 : i32
    return %c0_i32, %c0_i32_0 : i32, i32
  }
}

module attributes {stable_mosaic.version = 11 : i64} {
  func.func @_bn_gelu_kernel(%arg0: i32, %arg1: memref<1x8x128xf32, #tpu.memory_space<vmem>>, %arg2: memref<2x128xf32, #tpu.memory_space<vmem>>, %arg3: memref<1x8x128xf32, #tpu.memory_space<vmem>>) attributes {dimension_semantics = [#tpu.dimension_semantics<parallel>], iteration_bounds = array<i64: 2>, scalar_prefetch = 0 : i64, scratch_operands = 0 : i64, tpu.core_type = #tpu.core_type<tc>, window_params = [{transform_indices = @transform_0, window_bounds = array<i64: 1, 8, 128>}, {pipeline_mode = #tpu.pipeline_mode<synchronous>, transform_indices = @transform_1, window_bounds = array<i64: 2, 128>}, {transform_indices = @transform_2, window_bounds = array<i64: 1, 8, 128>}]} {
    %c0 = arith.constant 0 : index
    %c0_0 = arith.constant 0 : index
    %c0_1 = arith.constant 0 : index
    %0 = vector.load %arg1[%c0, %c0_0, %c0_1] : memref<1x8x128xf32, #tpu.memory_space<vmem>>, vector<1x8x128xf32>
    %1 = vector.shape_cast %0 : vector<1x8x128xf32> to vector<8x128xf32>
    %c0_2 = arith.constant 0 : index
    %c0_3 = arith.constant 0 : index
    %2 = vector.load %arg2[%c0_2, %c0_3] : memref<2x128xf32, #tpu.memory_space<vmem>>, vector<1x128xf32>
    %3 = vector.broadcast %2 : vector<1x128xf32> to vector<8x128xf32>
    %4 = arith.mulf %1, %3 : vector<8x128xf32>
    %c1 = arith.constant 1 : index
    %c0_4 = arith.constant 0 : index
    %5 = vector.load %arg2[%c1, %c0_4] : memref<2x128xf32, #tpu.memory_space<vmem>>, vector<1x128xf32>
    %6 = vector.broadcast %5 : vector<1x128xf32> to vector<8x128xf32>
    %7 = arith.addf %4, %6 : vector<8x128xf32>
    %cst = arith.constant 5.000000e-01 : f32
    %8 = vector.broadcast %cst : f32 to vector<8x128xf32>
    %9 = arith.mulf %8, %7 : vector<8x128xf32>
    %cst_5 = arith.constant 0.707106769 : f32
    %10 = vector.broadcast %cst_5 : f32 to vector<8x128xf32>
    %11 = arith.mulf %7, %10 : vector<8x128xf32>
    %12 = math.erf %11 : vector<8x128xf32>
    %cst_6 = arith.constant 1.000000e+00 : f32
    %13 = vector.broadcast %cst_6 : f32 to vector<8x128xf32>
    %14 = arith.addf %13, %12 : vector<8x128xf32>
    %15 = arith.mulf %9, %14 : vector<8x128xf32>
    %c0_7 = arith.constant 0 : index
    %c0_8 = arith.constant 0 : index
    %c0_9 = arith.constant 0 : index
    %16 = vector.load %arg3[%c0_7, %c0_8, %c0_9] : memref<1x8x128xf32, #tpu.memory_space<vmem>>, vector<1x8x128xf32>
    %17 = vector.shape_cast %16 : vector<1x8x128xf32> to vector<8x128xf32>
    %18 = vector.shape_cast %15 : vector<8x128xf32> to vector<1x8x128xf32>
    tpu.vector_store %arg3[%c0_7, %c0_8, %c0_9], %18 {strides = array<i32>} : memref<1x8x128xf32, #tpu.memory_space<vmem>>, vector<1x8x128xf32>,
    return
  }
  func.func @transform_0(%arg0: i32) -> (i32, i32, i32) {
    %c0_i32 = arith.constant 0 : i32
    %c0_i32_0 = arith.constant 0 : i32
    %c0_i32_1 = arith.constant 0 : i32
    return %arg0, %c0_i32, %c0_i32_0 : i32, i32, i32
  }
  func.func @transform_1(%arg0: i32) -> (i32, i32) {
    %c0_i32 = arith.constant 0 : i32
    %c0_i32_0 = arith.constant 0 : i32
    %c0_i32_1 = arith.constant 0 : i32
    return %c0_i32, %c0_i32_0 : i32, i32
  }
  func.func @transform_2(%arg0: i32) -> (i32, i32, i32) {
    %c0_i32 = arith.constant 0 : i32
    %c0_i32_0 = arith.constant 0 : i32
    %c0_i32_1 = arith.constant 0 : i32
    return %arg0, %c0_i32, %c0_i32_0 : i32, i32, i32
  }
}

module attributes {stable_mosaic.version = 11 : i64} {
  func.func @_bn1_res_conv2_kernel(%arg0: i32, %arg1: memref<1x16x128xf32, #tpu.memory_space<vmem>>, %arg2: memref<1x18x128xf32, #tpu.memory_space<vmem>>, %arg3: memref<2x128xf32, #tpu.memory_space<vmem>>, %arg4: memref<128x128xf32, #tpu.memory_space<vmem>>, %arg5: memref<1x128xf32, #tpu.memory_space<vmem>>, %arg6: memref<512x128xf32, #tpu.memory_space<vmem>>, %arg7: memref<1x8x128xf32, #tpu.memory_space<vmem>>, %arg8: memref<2x128xf32, #tpu.memory_space<vmem>>, %arg9: memref<2x128xf32, #tpu.memory_space<vmem>>, %arg10: memref<18x128xf32, #tpu.memory_space<vmem>>) attributes {dimension_semantics = [#tpu.dimension_semantics<arbitrary>], iteration_bounds = array<i64: 2>, scalar_prefetch = 0 : i64, scratch_operands = 2 : i64, tpu.core_type = #tpu.core_type<tc>, window_params = [{transform_indices = @transform_0, window_bounds = array<i64: 1, 16, 128>}, {transform_indices = @transform_1, window_bounds = array<i64: 1, 18, 128>}, {pipeline_mode = #tpu.pipeline_mode<synchronous>, transform_indices = @transform_2, window_bounds = array<i64: 2, 128>}, {pipeline_mode = #tpu.pipeline_mode<synchronous>, transform_indices = @transform_3, window_bounds = array<i64: 128, 128>}, {pipeline_mode = #tpu.pipeline_mode<synchronous>, transform_indices = @transform_4, window_bounds = array<i64: 1, 128>}, {pipeline_mode = #tpu.pipeline_mode<synchronous>, transform_indices = @transform_5, window_bounds = array<i64: 512, 128>}, {transform_indices = @transform_6, window_bounds = array<i64: 1, 8, 128>}, {pipeline_mode = #tpu.pipeline_mode<synchronous>, transform_indices = @transform_7, window_bounds = array<i64: 2, 128>}]} {
    %c0 = arith.constant 0 : index
    %c0_0 = arith.constant 0 : index
    %c0_1 = arith.constant 0 : index
    %0 = vector.load %arg1[%c0, %c0_0, %c0_1] : memref<1x16x128xf32, #tpu.memory_space<vmem>>, vector<1x16x128xf32>
    %1 = vector.shape_cast %0 : vector<1x16x128xf32> to vector<16x128xf32>
    %c0_2 = arith.constant 0 : index
    %c0_3 = arith.constant 0 : index
    %2 = vector.load %arg3[%c0_2, %c0_3] : memref<2x128xf32, #tpu.memory_space<vmem>>, vector<1x128xf32>
    %3 = vector.broadcast %2 : vector<1x128xf32> to vector<16x128xf32>
    %4 = arith.mulf %1, %3 : vector<16x128xf32>
    %c1 = arith.constant 1 : index
    %c0_4 = arith.constant 0 : index
    %5 = vector.load %arg3[%c1, %c0_4] : memref<2x128xf32, #tpu.memory_space<vmem>>, vector<1x128xf32>
    %6 = vector.broadcast %5 : vector<1x128xf32> to vector<16x128xf32>
    %7 = arith.addf %4, %6 : vector<16x128xf32>
    %cst = arith.constant 5.000000e-01 : f32
    %8 = vector.broadcast %cst : f32 to vector<16x128xf32>
    %9 = arith.mulf %8, %7 : vector<16x128xf32>
    %cst_5 = arith.constant 0.707106769 : f32
    %10 = vector.broadcast %cst_5 : f32 to vector<16x128xf32>
    %11 = arith.mulf %7, %10 : vector<16x128xf32>
    %12 = math.erf %11 : vector<16x128xf32>
    %cst_6 = arith.constant 1.000000e+00 : f32
    %13 = vector.broadcast %cst_6 : f32 to vector<16x128xf32>
    %14 = arith.addf %13, %12 : vector<16x128xf32>
    %15 = arith.mulf %9, %14 : vector<16x128xf32>
    %c0_7 = arith.constant 0 : index
    %c1_8 = arith.constant 1 : index
    %c0_9 = arith.constant 0 : index
    %16 = vector.load %arg2[%c0_7, %c1_8, %c0_9] : memref<1x18x128xf32, #tpu.memory_space<vmem>>, vector<1x16x128xf32>
    %17 = vector.shape_cast %16 : vector<1x16x128xf32> to vector<16x128xf32>
    %c0_10 = arith.constant 0 : index
    %c0_11 = arith.constant 0 : index
    %18 = vector.load %arg4[%c0_10, %c0_11] : memref<128x128xf32, #tpu.memory_space<vmem>>, vector<128x128xf32>
    %cst_12 = arith.constant dense<0.000000e+00> : vector<16x128xf32>
    %19 = tpu.matmul %17, %18, %cst_12 {dimension_numbers = #tpu.dot_dimension_numbers<[1], [0], [0], [1], [0, 0, 1, 1], [], []>} : vector<16x128xf32>, vector<128x128xf32>, vector<16x128xf32> -> vector<16x128xf32>
    %20 = arith.addf %15, %19 : vector<16x128xf32>
    %c0_13 = arith.constant 0 : index
    %c0_14 = arith.constant 0 : index
    %21 = vector.load %arg5[%c0_13, %c0_14] : memref<1x128xf32, #tpu.memory_space<vmem>>, vector<1x128xf32>
    %22 = vector.broadcast %21 : vector<1x128xf32> to vector<16x128xf32>
    %23 = arith.addf %20, %22 : vector<16x128xf32>
    %cst_15 = arith.constant 0.000000e+00 : f32
    %24 = vector.broadcast %cst_15 : f32 to vector<1x128xf32>
    %c0_16 = arith.constant 0 : index
    %c0_17 = arith.constant 0 : index
    %25 = vector.load %arg10[%c0_16, %c0_17] : memref<18x128xf32, #tpu.memory_space<vmem>>, vector<1x128xf32>
    tpu.vector_store %arg10[%c0_16, %c0_17], %24 {strides = array<i32>} : memref<18x128xf32, #tpu.memory_space<vmem>>, vector<1x128xf32>,
    %c17 = arith.constant 17 : index
    %c0_18 = arith.constant 0 : index
    %26 = vector.load %arg10[%c17, %c0_18] : memref<18x128xf32, #tpu.memory_space<vmem>>, vector<1x128xf32>
    tpu.vector_store %arg10[%c17, %c0_18], %24 {strides = array<i32>} : memref<18x128xf32, #tpu.memory_space<vmem>>, vector<1x128xf32>,
    %c1_19 = arith.constant 1 : index
    %c0_20 = arith.constant 0 : index
    %27 = vector.load %arg10[%c1_19, %c0_20] : memref<18x128xf32, #tpu.memory_space<vmem>>, vector<16x128xf32>
    tpu.vector_store %arg10[%c1_19, %c0_20], %23 {strides = array<i32>} : memref<18x128xf32, #tpu.memory_space<vmem>>, vector<16x128xf32>,
    %c0_21 = arith.constant 0 : index
    %c0_22 = arith.constant 0 : index
    %28 = tpu.strided_load %arg10[%c0_21, %c0_22] {strides = array<i32: 2, 1>} : memref<18x128xf32, #tpu.memory_space<vmem>>, vector<8x128xf32>
    %c1_23 = arith.constant 1 : index
    %c0_24 = arith.constant 0 : index
    %29 = tpu.strided_load %arg10[%c1_23, %c0_24] {strides = array<i32: 2, 1>} : memref<18x128xf32, #tpu.memory_space<vmem>>, vector<8x128xf32>
    %c2 = arith.constant 2 : index
    %c0_25 = arith.constant 0 : index
    %30 = tpu.strided_load %arg10[%c2, %c0_25] {strides = array<i32: 2, 1>} : memref<18x128xf32, #tpu.memory_space<vmem>>, vector<8x128xf32>
    %c3 = arith.constant 3 : index
    %c0_26 = arith.constant 0 : index
    %31 = tpu.strided_load %arg10[%c3, %c0_26] {strides = array<i32: 2, 1>} : memref<18x128xf32, #tpu.memory_space<vmem>>, vector<8x128xf32>
    %32 = tpu.concatenate %28, %29, %30, %31 in 1 : vector<8x128xf32>, vector<8x128xf32>, vector<8x128xf32>, vector<8x128xf32> -> vector<8x512xf32>
    %c0_27 = arith.constant 0 : index
    %c0_28 = arith.constant 0 : index
    %33 = vector.load %arg6[%c0_27, %c0_28] : memref<512x128xf32, #tpu.memory_space<vmem>>, vector<512x128xf32>
    %cst_29 = arith.constant dense<0.000000e+00> : vector<8x128xf32>
    %34 = tpu.matmul %32, %33, %cst_29 {dimension_numbers = #tpu.dot_dimension_numbers<[1], [0], [0], [1], [0, 0, 1, 1], [], []>} : vector<8x512xf32>, vector<512x128xf32>, vector<8x128xf32> -> vector<8x128xf32>
    %c0_30 = arith.constant 0 : index
    %c0_31 = arith.constant 0 : index
    %c0_32 = arith.constant 0 : index
    %35 = vector.load %arg7[%c0_30, %c0_31, %c0_32] : memref<1x8x128xf32, #tpu.memory_space<vmem>>, vector<1x8x128xf32>
    %36 = vector.shape_cast %35 : vector<1x8x128xf32> to vector<8x128xf32>
    %37 = vector.shape_cast %34 : vector<8x128xf32> to vector<1x8x128xf32>
    tpu.vector_store %arg7[%c0_30, %c0_31, %c0_32], %37 {strides = array<i32>} : memref<1x8x128xf32, #tpu.memory_space<vmem>>, vector<1x8x128xf32>,
    %cst_33 = arith.constant dense<0.000000e+00> : vector<128xf32>
    %38 = vector.multi_reduction <add>, %34, %cst_33 [0] : vector<8x128xf32> to vector<128xf32>
    %39 = vector.shape_cast %38 : vector<128xf32> to vector<1x128xf32>
    %40 = arith.mulf %34, %34 : vector<8x128xf32>
    %cst_34 = arith.constant dense<0.000000e+00> : vector<128xf32>
    %41 = vector.multi_reduction <add>, %40, %cst_34 [0] : vector<8x128xf32> to vector<128xf32>
    %42 = vector.shape_cast %41 : vector<128xf32> to vector<1x128xf32>
    %43 = tpu.concatenate %39, %42 in 0 : vector<1x128xf32>, vector<1x128xf32> -> vector<2x128xf32>
    %c0_i32 = arith.constant 0 : i32
    %44 = arith.cmpi eq, %arg0, %c0_i32 : i32
    %45 = arith.extui %44 : i1 to i32
    %c0_i32_35 = arith.constant 0 : i32
    %46 = arith.cmpi ne, %45, %c0_i32_35 : i32
    scf.if %46 {
      %c0_39 = arith.constant 0 : index
      %c0_40 = arith.constant 0 : index
      %53 = vector.load %arg9[%c0_39, %c0_40] : memref<2x128xf32, #tpu.memory_space<vmem>>, vector<2x128xf32>
      tpu.vector_store %arg9[%c0_39, %c0_40], %43 {strides = array<i32>} : memref<2x128xf32, #tpu.memory_space<vmem>>, vector<2x128xf32>,
    } else {
    }
    %c0_i32_36 = arith.constant 0 : i32
    %47 = arith.cmpi sgt, %arg0, %c0_i32_36 : i32
    %48 = arith.extui %47 : i1 to i32
    %c0_i32_37 = arith.constant 0 : i32
    %49 = arith.cmpi ne, %48, %c0_i32_37 : i32
    scf.if %49 {
      %c0_39 = arith.constant 0 : index
      %c0_40 = arith.constant 0 : index
      %53 = vector.load %arg9[%c0_39, %c0_40] : memref<2x128xf32, #tpu.memory_space<vmem>>, vector<2x128xf32>
      %54 = arith.addf %53, %43 : vector<2x128xf32>
      %c0_41 = arith.constant 0 : index
      %c0_42 = arith.constant 0 : index
      %55 = vector.load %arg9[%c0_41, %c0_42] : memref<2x128xf32, #tpu.memory_space<vmem>>, vector<2x128xf32>
      tpu.vector_store %arg9[%c0_41, %c0_42], %54 {strides = array<i32>} : memref<2x128xf32, #tpu.memory_space<vmem>>, vector<2x128xf32>,
    } else {
    }
    %c1_i32 = arith.constant 1 : i32
    %50 = arith.cmpi eq, %arg0, %c1_i32 : i32
    %51 = arith.extui %50 : i1 to i32
    %c0_i32_38 = arith.constant 0 : i32
    %52 = arith.cmpi ne, %51, %c0_i32_38 : i32
    scf.if %52 {
      %c0_39 = arith.constant 0 : index
      %c0_40 = arith.constant 0 : index
      %53 = vector.load %arg9[%c0_39, %c0_40] : memref<2x128xf32, #tpu.memory_space<vmem>>, vector<2x128xf32>
      %c0_41 = arith.constant 0 : index
      %c0_42 = arith.constant 0 : index
      %54 = vector.load %arg8[%c0_41, %c0_42] : memref<2x128xf32, #tpu.memory_space<vmem>>, vector<2x128xf32>
      tpu.vector_store %arg8[%c0_41, %c0_42], %53 {strides = array<i32>} : memref<2x128xf32, #tpu.memory_space<vmem>>, vector<2x128xf32>,
    } else {
    }
    return
  }
  func.func @transform_0(%arg0: i32) -> (i32, i32, i32) {
    %c0_i32 = arith.constant 0 : i32
    %c0_i32_0 = arith.constant 0 : i32
    %c0_i32_1 = arith.constant 0 : i32
    return %arg0, %c0_i32, %c0_i32_0 : i32, i32, i32
  }
  func.func @transform_1(%arg0: i32) -> (i32, i32, i32) {
    %c0_i32 = arith.constant 0 : i32
    %c0_i32_0 = arith.constant 0 : i32
    %c0_i32_1 = arith.constant 0 : i32
    return %arg0, %c0_i32, %c0_i32_0 : i32, i32, i32
  }
  func.func @transform_2(%arg0: i32) -> (i32, i32) {
    %c0_i32 = arith.constant 0 : i32
    %c0_i32_0 = arith.constant 0 : i32
    %c0_i32_1 = arith.constant 0 : i32
    return %c0_i32, %c0_i32_0 : i32, i32
  }
  func.func @transform_3(%arg0: i32) -> (i32, i32) {
    %c0_i32 = arith.constant 0 : i32
    %c0_i32_0 = arith.constant 0 : i32
    %c0_i32_1 = arith.constant 0 : i32
    return %c0_i32, %c0_i32_0 : i32, i32
  }
  func.func @transform_4(%arg0: i32) -> (i32, i32) {
    %c0_i32 = arith.constant 0 : i32
    %c0_i32_0 = arith.constant 0 : i32
    %c0_i32_1 = arith.constant 0 : i32
    return %c0_i32, %c0_i32_0 : i32, i32
  }
  func.func @transform_5(%arg0: i32) -> (i32, i32) {
    %c0_i32 = arith.constant 0 : i32
    %c0_i32_0 = arith.constant 0 : i32
    %c0_i32_1 = arith.constant 0 : i32
    return %c0_i32, %c0_i32_0 : i32, i32
  }
  func.func @transform_6(%arg0: i32) -> (i32, i32, i32) {
    %c0_i32 = arith.constant 0 : i32
    %c0_i32_0 = arith.constant 0 : i32
    %c0_i32_1 = arith.constant 0 : i32
    return %arg0, %c0_i32, %c0_i32_0 : i32, i32, i32
  }
  func.func @transform_7(%arg0: i32) -> (i32, i32) {
    %c0_i32 = arith.constant 0 : i32
    %c0_i32_0 = arith.constant 0 : i32
    %c0_i32_1 = arith.constant 0 : i32
    return %c0_i32, %c0_i32_0 : i32, i32
  }
}

</mosaic_0001>

<llo_original>
// kernel: conv_block_forward.3
$region0: #{conv_block_forward.3}
  #allocation0 [shape = 'u32[]', space=smem, size = 0x4, offset = 0x4, fixed_abs, tag = 'smem constant byte address 0x4 - core index']
  #allocation1 [shape = 'u32[144,128]{1,0:T(1,128)}', space=vmem, size = 0x12000, scoped, tag = 'internal scratch']
  #allocation2 [shape = 'f32[2,128]{1,0:T(2,128)}', space=vmem, size = 0x400, scoped, tag = 'scratch operand']
  %s0 = inlined_call_operand.hbm [shape: f32[2,18,128], index: 0, kind: input, shape index: {}]
  %s1 = inlined_call_operand.hbm [shape: f32[384,128], index: 1, kind: input, shape index: {}]
  %s2 = inlined_call_operand.hbm [shape: f32[2,16,128], index: 2, kind: output, shape index: {0}]
  %s3 = inlined_call_operand.hbm [shape: f32[2,128], index: 3, kind: output, shape index: {1}]
  %4 = xla_tuple %s2, %s3
  %s5 = sld [smem:[#allocation0]]
  $region69: #{conv_block_forward.3} parent=0
    _
  %s7 = ssub.s32 1, %s5
  %s8 = scalar_select 0, %s7, %s5
  $region1: #{conv_block_forward.3} parent=0
    #allocation3 [shape = 'u8[24576]{0}', space=vmem, size = 0x6000, scoped, tag = 'input window, operand 0']
    #allocation4 [shape = 's32[2]{0}', space=sflag, size = 0x8, scoped, tag = 'scoped memory for conv_block_forward.3']
    #allocation5 [shape = 's32[2]{0}', space=sflag, size = 0x8, scoped, tag = 'scoped memory for conv_block_forward.3']
    #allocation6 [shape = 'u8[196608]{0}', space=vmem, size = 0x30000, scoped, tag = 'input window, operand 1, single buffered']
    #allocation7 [shape = 's32[1]{0}', space=sflag, size = 0x4, scoped, tag = 'scoped memory for conv_block_forward.3']
    #allocation8 [shape = 'u8[16384]{0}', space=vmem, size = 0x4000, scoped, tag = 'output window, operand 0']
    #allocation9 [shape = 'u8[1024]{0}', space=vmem, size = 0x400, scoped, tag = 'output window, operand 1, single buffered']
    #allocation10 [shape = 's32[1]{0}', space=sflag, size = 0x4, scoped, tag = 'scoped memory for conv_block_forward.3']
    %9 = vsyncpa [#allocation4], 0
    %s10 = scalar_lea.sflag [#allocation4], 1
    %11 = vsyncpa %s10, 0
    %12 = vsyncpa [#allocation7], 0
    %13 = vsyncpa [#allocation5], 0
    %s14 = scalar_lea.sflag [#allocation5], 1
    %15 = vsyncpa %s14, 0
    %16 = vsyncpa [#allocation10], 0
    loop: start=0, step=1, limit=4
    $region2: #{conv_block_forward.3} parent=1 // loop_pre_header
      _
    $region3: #{conv_block_forward.3} parent=1 // loop_header
      %s18 = sphi 0, %s22
      %p19 = scmp.ge.s32.totalorder %s18, 4
      %s28 = sphi 0, %s30
      %s31 = sphi 0, %s28
      %s32 = sphi 0, %s31
      %s48 = sphi 0, %s32
      %s52 = sphi 0, %s52
      %s54 = sphi 0, %s52
      %s55 = sphi 0, %s54
      %s69 = sphi 0, %s55
      %s75 = sphi 0, %s77
      %s78 = sphi 0, %s75
      %s79 = sphi 0, %s78
      %s95 = sphi 0, %s79
      %s99 = sphi 0, %s99
      %s101 = sphi 0, %s99
      %s102 = sphi 0, %s101
      %s116 = sphi 0, %s102
    $region4: #{conv_block_forward.3} parent=1 // loop_header_branch
      %21 = sbr.rel (%p19) target = $region8
    $region5: #{conv_block_forward.3} parent=1 // loop_body
      %s23 = ssub.s32 %s18, 1
      %s24 = ssub.s32 %s18, 2
      %s25 = sadd.s32 %s18, 1
      %s26 = ssub.s32 %s18, %s25
      %p27 = scmp.eq.s32.totalorder %s26, 0
      %s29 = sadd.s32 %s28, 1
      %s30 = scalar_select %p27, %s28, %s29
      %p33 = pneg %p27
      %p34 = scmp.eq.s32.totalorder %s18, 1
      %p35 = por %p33, %p34
      %p36 = scmp.ne.s32.totalorder %s28, %s31
      %p37 = scmp.eq.s32.totalorder %s18, 0
      %p38 = por %p36, %p37
      %p39 = scmp.ne.s32.totalorder %s28, %s31
      %p40 = scmp.eq.s32.totalorder %s23, 1
      %p41 = por %p39, %p40
      %p42 = scmp.ne.s32.totalorder %s31, %s32
      %p43 = scmp.eq.s32.totalorder %s23, 0
      %p44 = por %p42, %p43
      %p45 = scmp.ne.s32.totalorder %s31, %s32
      %p46 = scmp.eq.s32.totalorder %s24, 1
      %p47 = por %p45, %p46
      %p49 = scmp.ne.s32.totalorder %s32, %s48
      %p50 = scmp.eq.s32.totalorder %s24, 0
      %p51 = por %p49, %p50
      %s53 = sadd.s32 %s52, 1
      %p56 = scmp.eq.s32.totalorder %s18, 1
      %p57 = scmp.ne.s32.totalorder %s52, %s54
      %p58 = scmp.eq.s32.totalorder %s18, 0
      %p59 = por %p57, %p58
      %p60 = scmp.ne.s32.totalorder %s52, %s54
      %p61 = scmp.eq.s32.totalorder %s23, 1
      %p62 = por %p60, %p61
      %p63 = scmp.ne.s32.totalorder %s54, %s55
      %p64 = scmp.eq.s32.totalorder %s23, 0
      %p65 = por %p63, %p64
      %p66 = scmp.ne.s32.totalorder %s54, %s55
      %p67 = scmp.eq.s32.totalorder %s24, 1
      %p68 = por %p66, %p67
      %p70 = scmp.ne.s32.totalorder %s55, %s69
      %p71 = scmp.eq.s32.totalorder %s24, 0
      %p72 = por %p70, %p71
      %s73 = ssub.s32 %s18, %s25
      %p74 = scmp.eq.s32.totalorder %s73, 0
      %s76 = sadd.s32 %s75, 1
      %s77 = scalar_select %p74, %s75, %s76
      %p80 = pneg %p74
      %p81 = scmp.eq.s32.totalorder %s18, 1
      %p82 = por %p80, %p81
      %p83 = scmp.ne.s32.totalorder %s75, %s78
      %p84 = scmp.eq.s32.totalorder %s18, 0
      %p85 = por %p83, %p84
      %p86 = scmp.ne.s32.totalorder %s75, %s78
      %p87 = scmp.eq.s32.totalorder %s23, 1
      %p88 = por %p86, %p87
      %p89 = scmp.ne.s32.totalorder %s78, %s79
      %p90 = scmp.eq.s32.totalorder %s23, 0
      %p91 = por %p89, %p90
      %p92 = scmp.ne.s32.totalorder %s78, %s79
      %p93 = scmp.eq.s32.totalorder %s24, 1
      %p94 = por %p92, %p93
      %p96 = scmp.ne.s32.totalorder %s79, %s95
      %p97 = scmp.eq.s32.totalorder %s24, 0
      %p98 = por %p96, %p97
      %s100 = sadd.s32 %s99, 1
      %p103 = scmp.eq.s32.totalorder %s18, 1
      %p104 = scmp.ne.s32.totalorder %s99, %s101
      %p105 = scmp.eq.s32.totalorder %s18, 0
      %p106 = por %p104, %p105
      %p107 = scmp.ne.s32.totalorder %s99, %s101
      %p108 = scmp.eq.s32.totalorder %s23, 1
      %p109 = por %p107, %p108
      %p110 = scmp.ne.s32.totalorder %s101, %s102
      %p111 = scmp.eq.s32.totalorder %s23, 0
      %p112 = por %p110, %p111
      %p113 = scmp.ne.s32.totalorder %s101, %s102
      %p114 = scmp.eq.s32.totalorder %s24, 1
      %p115 = por %p113, %p114
      %p117 = scmp.ne.s32.totalorder %s102, %s116
      %p118 = scmp.eq.s32.totalorder %s24, 0
      %p119 = por %p117, %p118
      %p120 = scmp.le.s32.totalorder 1, %s18
      %p121 = scmp.lt.s32.totalorder %s18, 3
      %p122 = pnand %p120, %p121
      %p123 = pneg %p122
      // Predicated region
      $region9: #{conv_block_forward.3} parent=5 // pred_check
        _
      $region10: #{conv_block_forward.3} parent=5 // pred_check_branch
        %125 = sbr.rel (%p122) target = $region12
      $region11: #{conv_block_forward.3} parent=5 // pred_region
        %s126 = ssub.s32 %s18, 1
        // Predicated region
        $region13: #{conv_block_forward.3} parent=11 // pred_check
          %p127 = pneg %p65
        $region14: #{conv_block_forward.3} parent=11 // pred_check_branch
          %129 = sbr.rel (%p127) target = $region16
        $region15: #{conv_block_forward.3} parent=11 // pred_region
          %s131 = ssub.s32 6144, 6144
          %132 = vsyncadd [#allocation7], %s131
          %s133 = sshll.u32 [#allocation6], 4
          %s134 = int_to_ptr.vmem [resolvable:$true] %s133
          %139 = dma.hbm_to_vmem [thread:$0]  %s1, 6144, %s134, [#allocation7], 128, 128, 8
        $region16: #{conv_block_forward.3} parent=11 // pred_fallthru
          _
      $region12: #{conv_block_forward.3} parent=5 // pred_fallthru
        _
      %p140 = scmp.lt.s32.totalorder %s18, 2
      // Predicated region
      $region17: #{conv_block_forward.3} parent=5 // pred_check
        %p141 = pneg %p140
      $region18: #{conv_block_forward.3} parent=5 // pred_check_branch
        %143 = sbr.rel (%p141) target = $region20
      $region19: #{conv_block_forward.3} parent=5 // pred_region
        // Predicated region
        $region21: #{conv_block_forward.3} parent=19 // pred_check
          %p144 = pneg %p38
        $region22: #{conv_block_forward.3} parent=19 // pred_check_branch
          %146 = sbr.rel (%p144) target = $region24
        $region23: #{conv_block_forward.3} parent=19 // pred_region
          %s147 = sand.u32 %s28, 1
          %s148 = scalar_lea.sflag [#allocation4], %s147
          %s149 = sand.u32 %s28, 1
          %s150 = smul.addr %s149, 24
          %s151 = scalar_lea.vmem [#allocation3], %s150
          %s153 = ssub.s32 384, 384
          %154 = vsyncadd %s148, %s153
          %s155 = smul.addr %s18, 3
          %s156 = smul.addr %s155, 128
          %s157 = scalar_lea.hbm %s0, %s156
          %s158 = sshll.u32 %s151, 4
          %s159 = int_to_ptr.vmem [resolvable:$true] %s158
          %164 = dma.hbm_to_vmem [thread:$0]  %s157, 384, %s159, %s148, 128, 128, 8
        $region24: #{conv_block_forward.3} parent=19 // pred_fallthru
          _
      $region20: #{conv_block_forward.3} parent=5 // pred_fallthru
        _
      %p165 = scmp.le.s32.totalorder 1, %s18
      %p166 = scmp.lt.s32.totalorder %s18, 3
      %p167 = pnand %p165, %p166
      %p168 = pneg %p167
      // Predicated region
      $region25: #{conv_block_forward.3} parent=5 // pred_check
        _
      $region26: #{conv_block_forward.3} parent=5 // pred_check_branch
        %170 = sbr.rel (%p167) target = $region28
      $region27: #{conv_block_forward.3} parent=5 // pred_region
        %s171 = ssub.s32 %s18, 1
        %s172 = sand.u32 %s31, 1
        %s173 = scalar_lea.sflag [#allocation4], %s172
        %s174 = sand.u32 %s31, 1
        %s175 = smul.addr %s174, 24
        %s176 = scalar_lea.vmem [#allocation3], %s175
        // Predicated region
        $region29: #{conv_block_forward.3} parent=27 // pred_check
          %p177 = pneg %p44
        $region30: #{conv_block_forward.3} parent=27 // pred_check_branch
          %179 = sbr.rel (%p177) target = $region32
        $region31: #{conv_block_forward.3} parent=27 // pred_region
          %180 = dma.done %s173, 384
        $region32: #{conv_block_forward.3} parent=27 // pred_fallthru
          _
        // Predicated region
        $region33: #{conv_block_forward.3} parent=27 // pred_check
          %p181 = pneg %p65
        $region34: #{conv_block_forward.3} parent=27 // pred_check_branch
          %183 = sbr.rel (%p181) target = $region36
        $region35: #{conv_block_forward.3} parent=27 // pred_region
          %184 = dma.done [#allocation7], 6144
        $region36: #{conv_block_forward.3} parent=27 // pred_fallthru
          _
        %s185 = sand.u32 %s31, 1
        %s186 = scalar_lea.sflag [#allocation4], %s185
        %s187 = sand.u32 %s31, 1
        %s188 = smul.addr %s187, 24
        %s189 = scalar_lea.vmem [#allocation3], %s188
        %p190 = pneg %p44
        %p191 = pneg %p41
        %p192 = pneg %p65
        %p193 = pneg %p62
        %p194 = pneg %p91
        %p195 = pneg %p88
        %s196 = sand.u32 %s78, 1
        %s197 = scalar_lea.sflag [#allocation5], %s196
        %s198 = sand.u32 %s78, 1
        %s199 = smul.addr %s198, 16
        %s200 = scalar_lea.vmem [#allocation8], %s199
        %p201 = pneg %p112
        %p202 = pneg %p109
        %v203 = vld [vmem:[%s176] sm:$0xff]
        %v204 = vld [vmem:[%s176 + $0x8] sm:$0xff]
        %v205 = vld [vmem:[%s176 + $0x1] sm:$0xff]
        %v206 = vld [vmem:[%s176 + $0x9] sm:$0xff]
        %v207 = vld [vmem:[%s176 + $0x2] sm:$0xff]
        %v208 = vld [vmem:[%s176 + $0xa] sm:$0xff]
        %v209 = vld [vmem:[#allocation6] sm:$0xff]
        %v210 = vld [vmem:[#allocation6 + $0x8] sm:$0xff]
        %v211 = vld [vmem:[#allocation6 + $0x10] sm:$0xff]
        %v212 = vld [vmem:[#allocation6 + $0x18] sm:$0xff]
        %v213 = vld [vmem:[#allocation6 + $0x20] sm:$0xff]
        %v214 = vld [vmem:[#allocation6 + $0x28] sm:$0xff]
        %v215 = vld [vmem:[#allocation6 + $0x30] sm:$0xff]
        %v216 = vld [vmem:[#allocation6 + $0x38] sm:$0xff]
        %v217 = vld [vmem:[#allocation6 + $0x40] sm:$0xff]
        %v218 = vld [vmem:[#allocation6 + $0x48] sm:$0xff]
        %v219 = vld [vmem:[#allocation6 + $0x50] sm:$0xff]
        %v220 = vld [vmem:[#allocation6 + $0x58] sm:$0xff]
        %v221 = vld [vmem:[#allocation6 + $0x60] sm:$0xff]
        %v222 = vld [vmem:[#allocation6 + $0x68] sm:$0xff]
        %v223 = vld [vmem:[#allocation6 + $0x70] sm:$0xff]
        %v224 = vld [vmem:[#allocation6 + $0x78] sm:$0xff]
        %v225 = vld [vmem:[#allocation6 + $0x80] sm:$0xff]
        %v226 = vld [vmem:[#allocation6 + $0x88] sm:$0xff]
        %v227 = vld [vmem:[#allocation6 + $0x90] sm:$0xff]
        %v228 = vld [vmem:[#allocation6 + $0x98] sm:$0xff]
        %v229 = vld [vmem:[#allocation6 + $0xa0] sm:$0xff]
        %v230 = vld [vmem:[#allocation6 + $0xa8] sm:$0xff]
        %v231 = vld [vmem:[#allocation6 + $0xb0] sm:$0xff]
        %v232 = vld [vmem:[#allocation6 + $0xb8] sm:$0xff]
        %v233 = vld [vmem:[#allocation6 + $0xc0] sm:$0xff]
        %v234 = vld [vmem:[#allocation6 + $0xc8] sm:$0xff]
        %v235 = vld [vmem:[#allocation6 + $0xd0] sm:$0xff]
        %v236 = vld [vmem:[#allocation6 + $0xd8] sm:$0xff]
        %v237 = vld [vmem:[#allocation6 + $0xe0] sm:$0xff]
        %v238 = vld [vmem:[#allocation6 + $0xe8] sm:$0xff]
        %v239 = vld [vmem:[#allocation6 + $0xf0] sm:$0xff]
        %v240 = vld [vmem:[#allocation6 + $0xf8] sm:$0xff]
        %v241 = vld [vmem:[#allocation6 + $0x100] sm:$0xff]
        %v242 = vld [vmem:[#allocation6 + $0x108] sm:$0xff]
        %v243 = vld [vmem:[#allocation6 + $0x110] sm:$0xff]
        %v244 = vld [vmem:[#allocation6 + $0x118] sm:$0xff]
        %v245 = vld [vmem:[#allocation6 + $0x120] sm:$0xff]
        %v246 = vld [vmem:[#allocation6 + $0x128] sm:$0xff]
        %v247 = vld [vmem:[#allocation6 + $0x130] sm:$0xff]
        %v248 = vld [vmem:[#allocation6 + $0x138] sm:$0xff]
        %v249 = vld [vmem:[#allocation6 + $0x140] sm:$0xff]
        %v250 = vld [vmem:[#allocation6 + $0x148] sm:$0xff]
        %v251 = vld [vmem:[#allocation6 + $0x150] sm:$0xff]
        %v252 = vld [vmem:[#allocation6 + $0x158] sm:$0xff]
        %v253 = vld [vmem:[#allocation6 + $0x160] sm:$0xff]
        %v254 = vld [vmem:[#allocation6 + $0x168] sm:$0xff]
        %v255 = vld [vmem:[#allocation6 + $0x170] sm:$0xff]
        %v256 = vld [vmem:[#allocation6 + $0x178] sm:$0xff]
        %257 = vmatprep.subr.mxu0 0.0
        %258 = vmatpush1.msra.mxu0 %v209
        %259 = vmatprep.subr.mxu0 0.0
        %260 = vmatpush1.msra.mxu0 %v210
        %261 = vmatprep.subr.mxu0 0.0
        %262 = vmatpush1.msra.mxu0 %v211
        %263 = vmatprep.subr.mxu0 0.0
        %264 = vmatpush1.msra.mxu0 %v212
        %265 = vmatprep.subr.mxu0 0.0
        %266 = vmatpush1.msra.mxu0 %v213
        %267 = vmatprep.subr.mxu0 0.0
        %268 = vmatpush1.msra.mxu0 %v214
        %269 = vmatprep.subr.mxu0 0.0
        %270 = vmatpush1.msra.mxu0 %v215
        %271 = vmatprep.subr.mxu0 0.0
        %272 = vmatpush1.msra.mxu0 %v216
        %273 = vmatprep.subr.mxu0 0.0
        %274 = vmatpush1.msra.mxu0 %v217
        %275 = vmatprep.subr.mxu0 0.0
        %276 = vmatpush1.msra.mxu0 %v218
        %277 = vmatprep.subr.mxu0 0.0
        %278 = vmatpush1.msra.mxu0 %v219
        %279 = vmatprep.subr.mxu0 0.0
        %280 = vmatpush1.msra.mxu0 %v220
        %281 = vmatprep.subr.mxu0 0.0
        %282 = vmatpush1.msra.mxu0 %v221
        %283 = vmatprep.subr.mxu0 0.0
        %284 = vmatpush1.msra.mxu0 %v222
        %285 = vmatprep.subr.mxu0 0.0
        %286 = vmatpush1.msra.mxu0 %v223
        %287 = vmatprep.subr.mxu0 0.0
        %288 = vmatpush1.msra.mxu0 %v224
        %289 = vmatprep.subr.mxu0 0.0
        %290 = vmatpush1.msra.mxu0 %v225
        %291 = vmatprep.subr.mxu0 0.0
        %292 = vmatpush1.msra.mxu0 %v226
        %293 = vmatprep.subr.mxu0 0.0
        %294 = vmatpush1.msra.mxu0 %v227
        %295 = vmatprep.subr.mxu0 0.0
        %296 = vmatpush1.msra.mxu0 %v228
        %297 = vmatprep.subr.mxu0 0.0
        %298 = vmatpush1.msra.mxu0 %v229
        %299 = vmatprep.subr.mxu0 0.0
        %300 = vmatpush1.msra.mxu0 %v230
        %301 = vmatprep.subr.mxu0 0.0
        %302 = vmatpush1.msra.mxu0 %v231
        %303 = vmatprep.subr.mxu0 0.0
        %304 = vmatpush1.msra.mxu0 %v232
        %305 = vmatprep.subr.mxu0 0.0
        %306 = vmatpush1.msra.mxu0 %v233
        %307 = vmatprep.subr.mxu0 0.0
        %308 = vmatpush1.msra.mxu0 %v234
        %309 = vmatprep.subr.mxu0 0.0
        %310 = vmatpush1.msra.mxu0 %v235
        %311 = vmatprep.subr.mxu0 0.0
        %312 = vmatpush1.msra.mxu0 %v236
        %313 = vmatprep.subr.mxu0 0.0
        %314 = vmatpush1.msra.mxu0 %v237
        %315 = vmatprep.subr.mxu0 0.0
        %316 = vmatpush1.msra.mxu0 %v238
        %317 = vmatprep.subr.mxu0 0.0
        %318 = vmatpush1.msra.mxu0 %v239
        %319 = vmatprep.subr.mxu0 0.0
        %320 = vmatpush1.msra.mxu0 %v240
        %321 = vmatprep.mubr.f32.mxu0 %v205
        %322 = vmatmul.mubr.f32.gmra.mrb[0].mxu0 %v203
        %v323 = vpop.f32.mrb[0].mxu0
        %v324 = vadd.f32 0.0, %v323
        %v325 = vpop.f32.mrb[0].mxu0
        %326 = vmatprep.mubr.f32.mxu0 %v206
        %327 = vmatmul.mubr.f32.gmra.mrb[0].mxu0 %v204
        %v328 = vpop.f32.mrb[0].mxu0
        %v329 = vadd.f32 0.0, %v328
        %v330 = vpop.f32.mrb[0].mxu0
        %331 = vdwg.mxu0
        %332 = vmatprep.subr.mxu0 0.0
        %333 = vmatpush1.msra.mxu0 %v241
        %334 = vmatprep.subr.mxu0 0.0
        %335 = vmatpush1.msra.mxu0 %v242
        %336 = vmatprep.subr.mxu0 0.0
        %337 = vmatpush1.msra.mxu0 %v243
        %338 = vmatprep.subr.mxu0 0.0
        %339 = vmatpush1.msra.mxu0 %v244
        %340 = vmatprep.subr.mxu0 0.0
        %341 = vmatpush1.msra.mxu0 %v245
        %342 = vmatprep.subr.mxu0 0.0
        %343 = vmatpush1.msra.mxu0 %v246
        %344 = vmatprep.subr.mxu0 0.0
        %345 = vmatpush1.msra.mxu0 %v247
        %346 = vmatprep.subr.mxu0 0.0
        %347 = vmatpush1.msra.mxu0 %v248
        %348 = vmatprep.subr.mxu0 0.0
        %349 = vmatpush1.msra.mxu0 %v249
        %350 = vmatprep.subr.mxu0 0.0
        %351 = vmatpush1.msra.mxu0 %v250
        %352 = vmatprep.subr.mxu0 0.0
        %353 = vmatpush1.msra.mxu0 %v251
        %354 = vmatprep.subr.mxu0 0.0
        %355 = vmatpush1.msra.mxu0 %v252
        %356 = vmatprep.subr.mxu0 0.0
        %357 = vmatpush1.msra.mxu0 %v253
        %358 = vmatprep.subr.mxu0 0.0
        %359 = vmatpush1.msra.mxu0 %v254
        %360 = vmatprep.subr.mxu0 0.0
        %361 = vmatpush1.msra.mxu0 %v255
        %362 = vmatprep.subr.mxu0 0.0
        %363 = vmatpush1.msra.mxu0 %v256
        %364 = vmatprep.subr.mxu0 0.0
        %365 = vmatpush1.msra.mxu0 0.0
        %366 = vmatprep.subr.mxu0 0.0
        %367 = vmatpush1.msra.mxu0 0.0
        %368 = vmatprep.subr.mxu0 0.0
        %369 = vmatpush1.msra.mxu0 0.0
        %370 = vmatprep.subr.mxu0 0.0
        %371 = vmatpush1.msra.mxu0 0.0
        %372 = vmatprep.subr.mxu0 0.0
        %373 = vmatpush1.msra.mxu0 0.0
        %374 = vmatprep.subr.mxu0 0.0
        %375 = vmatpush1.msra.mxu0 0.0
        %376 = vmatprep.subr.mxu0 0.0
        %377 = vmatpush1.msra.mxu0 0.0
        %378 = vmatprep.subr.mxu0 0.0
        %379 = vmatpush1.msra.mxu0 0.0
        %380 = vmatprep.subr.mxu0 0.0
        %381 = vmatpush1.msra.mxu0 0.0
        %382 = vmatprep.subr.mxu0 0.0
        %383 = vmatpush1.msra.mxu0 0.0
        %384 = vmatprep.subr.mxu0 0.0
        %385 = vmatpush1.msra.mxu0 0.0
        %386 = vmatprep.subr.mxu0 0.0
        %387 = vmatpush1.msra.mxu0 0.0
        %388 = vmatprep.subr.mxu0 0.0
        %389 = vmatpush1.msra.mxu0 0.0
        %390 = vmatprep.subr.mxu0 0.0
        %391 = vmatpush1.msra.mxu0 0.0
        %392 = vmatprep.subr.mxu0 0.0
        %393 = vmatpush1.msra.mxu0 0.0
        %394 = vmatprep.subr.mxu0 0.0
        %395 = vmatpush1.msra.mxu0 0.0
        %396 = vmatprep.mubr.f32.mxu0 0.0
        %397 = vmatmul.mubr.f32.gmra.mrb[0].mxu0 %v207
        %v398 = vpop.f32.mrb[0].mxu0
        %v399 = vadd.f32 %v324, %v398
        %v400 = vpop.f32.mrb[0].mxu0
        %401 = vmatprep.mubr.f32.mxu0 0.0
        %402 = vmatmul.mubr.f32.gmra.mrb[0].mxu0 %v208
        %v403 = vpop.f32.mrb[0].mxu0
        %v404 = vadd.f32 %v329, %v403
        %v405 = vpop.f32.mrb[0].mxu0
        %406 = vdwg.mxu0
        %407 = vst [vmem:[%s200] sm:$0xff] %v399
        %408 = vst [vmem:[%s200 + $0x8] sm:$0xff] %v404
        %v409 = vadd.f32 %v399, %v404
        %v410 = vrot.slane %v409, 4
        %v411 = vadd.f32 %v409, %v410
        %v412 = vrot.slane %v411, 2
        %v413 = vadd.f32 %v411, %v412
        %v414 = vrot.slane %v413, 1
        %v415 = vadd.f32 %v413, %v414
        %v416 = vmul.f32 %v399, %v399
        %v417 = vmul.f32 %v404, %v404
        %v418 = vadd.f32 %v416, %v417
        %v419 = vrot.slane %v418, 4
        %v420 = vadd.f32 %v418, %v419
        %v421 = vrot.slane %v420, 2
        %v422 = vadd.f32 %v420, %v421
        %v423 = vrot.slane %v422, 1
        %v424 = vadd.f32 %v422, %v423
        %vm425 = vcmask 1040384
        %v426 = vsel %vm425, %v415, %v424
        %p427 = scmp.eq.s32.totalorder %s23, 0
        // Predicated region
        $region37: #{conv_block_forward.3} parent=27 // pred_check
          %p428 = pneg %p427
        $region38: #{conv_block_forward.3} parent=27 // pred_check_branch
          %430 = sbr.rel (%p428) target = $region40
        $region39: #{conv_block_forward.3} parent=27 // pred_region
          %431 = vst [vmem:[#allocation2] sm:$0x3] %v426
        $region40: #{conv_block_forward.3} parent=27 // pred_fallthru
          _
        %p432 = scmp.gt.s32.totalorder %s23, 0
        // Predicated region
        $region41: #{conv_block_forward.3} parent=27 // pred_check
          %p433 = pneg %p432
        $region42: #{conv_block_forward.3} parent=27 // pred_check_branch
          %435 = sbr.rel (%p433) target = $region44
        $region43: #{conv_block_forward.3} parent=27 // pred_region
          %v436 = vld [vmem:[#allocation2] sm:$0x3]
          %v437 = vadd.f32 %v436, %v426
          %438 = vst [vmem:[#allocation2] sm:$0x3] %v437
        $region44: #{conv_block_forward.3} parent=27 // pred_fallthru
          _
        %p439 = scmp.eq.s32.totalorder %s23, 1
        // Predicated region
        $region45: #{conv_block_forward.3} parent=27 // pred_check
          %p440 = pneg %p439
        $region46: #{conv_block_forward.3} parent=27 // pred_check_branch
          %442 = sbr.rel (%p440) target = $region48
        $region47: #{conv_block_forward.3} parent=27 // pred_region
          %v443 = vld [vmem:[#allocation2] sm:$0x3]
          %444 = vst [vmem:[#allocation9] sm:$0x3] %v443
        $region48: #{conv_block_forward.3} parent=27 // pred_fallthru
          _
        %s445 = sand.u32 %s78, 1
        %s446 = scalar_lea.sflag [#allocation5], %s445
        %s447 = sand.u32 %s78, 1
        %s448 = smul.addr %s447, 16
        %s449 = scalar_lea.vmem [#allocation8], %s448
        // Predicated region
        $region49: #{conv_block_forward.3} parent=27 // pred_check
          %p450 = pneg %p88
        $region50: #{conv_block_forward.3} parent=27 // pred_check_branch
          %452 = sbr.rel (%p450) target = $region52
        $region51: #{conv_block_forward.3} parent=27 // pred_region
          %s454 = ssub.s32 256, 256
          %455 = vsyncadd %s446, %s454
          %s456 = smul.addr %s23, 2
          %s457 = smul.addr %s456, 128
          %s458 = scalar_lea.hbm %s2, %s457
          %s459 = sshll.u32 %s449, 4
          %s460 = int_to_ptr.vmem [resolvable:$true] %s459
          %465 = dma.vmem_to_hbm [thread:$0]  %s460, 256, %s458, %s446, 128, 128, 8
        $region52: #{conv_block_forward.3} parent=27 // pred_fallthru
          _
        // Predicated region
        $region53: #{conv_block_forward.3} parent=27 // pred_check
          %p466 = pneg %p109
        $region54: #{conv_block_forward.3} parent=27 // pred_check_branch
          %468 = sbr.rel (%p466) target = $region56
        $region55: #{conv_block_forward.3} parent=27 // pred_region
          %s470 = ssub.s32 32, 32
          %471 = vsyncadd [#allocation10], %s470
          %s473 = sshll.u32 [#allocation9], 4
          %s474 = int_to_ptr.vmem [resolvable:$true] %s473
          %476 = dma.vmem_to_hbm [thread:$0]  %s474, 32, %s3, [#allocation10]
        $region56: #{conv_block_forward.3} parent=27 // pred_fallthru
          _
        // Predicated region
        $region57: #{conv_block_forward.3} parent=27 // pred_check
          %p477 = pneg %p109
        $region58: #{conv_block_forward.3} parent=27 // pred_check_branch
          %479 = sbr.rel (%p477) target = $region60
        $region59: #{conv_block_forward.3} parent=27 // pred_region
          %480 = dma.done [#allocation10], 32
        $region60: #{conv_block_forward.3} parent=27 // pred_fallthru
          _
      $region28: #{conv_block_forward.3} parent=5 // pred_fallthru
        _
      %p481 = scmp.le.s32.totalorder 2, %s18
      // Predicated region
      $region61: #{conv_block_forward.3} parent=5 // pred_check
        %p482 = pneg %p481
      $region62: #{conv_block_forward.3} parent=5 // pred_check_branch
        %484 = sbr.rel (%p482) target = $region64
      $region63: #{conv_block_forward.3} parent=5 // pred_region
        %s485 = ssub.s32 %s18, 2
        // Predicated region
        $region65: #{conv_block_forward.3} parent=63 // pred_check
          %p486 = pneg %p94
        $region66: #{conv_block_forward.3} parent=63 // pred_check_branch
          %488 = sbr.rel (%p486) target = $region68
        $region67: #{conv_block_forward.3} parent=63 // pred_region
          %s489 = sand.u32 %s79, 1
          %s490 = scalar_lea.sflag [#allocation5], %s489
          %s491 = sand.u32 %s79, 1
          %s492 = smul.addr %s491, 16
          %s493 = scalar_lea.vmem [#allocation8], %s492
          %494 = dma.done %s490, 256
        $region68: #{conv_block_forward.3} parent=63 // pred_fallthru
          _
      $region64: #{conv_block_forward.3} parent=5 // pred_fallthru
        _
    $region6: #{conv_block_forward.3} parent=1 // loop_footer
      %s22 = sadd.s32 1, %s18
    $region7: #{conv_block_forward.3} parent=1 // loop_footer_branch
      %17 = sbr.rel target = $region3
    $region8: #{conv_block_forward.3} parent=1 // loop_exit
      _
    %495 = vsyncpa [#allocation4], 1
    %s496 = scalar_lea.sflag [#allocation4], 1
    %497 = vsyncpa %s496, 1
    %498 = vsyncpa [#allocation7], 1
    %499 = vsyncpa [#allocation5], 1
    %s500 = scalar_lea.sflag [#allocation5], 1
    %501 = vsyncpa %s500, 1
    %502 = vsyncpa [#allocation10], 1

// kernel: conv_block_forward.5
$region0: #{conv_block_forward.5}
  #allocation0 [shape = 'u32[]', space=smem, size = 0x4, offset = 0x4, fixed_abs, tag = 'smem constant byte address 0x4 - core index']
  #allocation1 [shape = 'u32[144,128]{1,0:T(1,128)}', space=vmem, size = 0x12000, scoped, tag = 'internal scratch']
  %s0 = inlined_call_operand.hbm [shape: f32[2,8,128], index: 0, kind: input, shape index: {}]
  %s1 = inlined_call_operand.hbm [shape: f32[2,128], index: 1, kind: input, shape index: {}]
  %s2 = inlined_call_operand.hbm [shape: f32[2,8,128], index: 2, kind: output, shape index: {}]
  %s3 = sld [smem:[#allocation0]]
  $region49: #{conv_block_forward.5} parent=0
    _
  %s5 = ssub.s32 1, %s3
  %s6 = scalar_select 0, %s5, %s3
  $region1: #{conv_block_forward.5} parent=0
    #allocation2 [shape = 'u8[8192]{0}', space=vmem, size = 0x2000, scoped, tag = 'input window, operand 0']
    #allocation3 [shape = 's32[2]{0}', space=sflag, size = 0x8, scoped, tag = 'scoped memory for conv_block_forward.5']
    #allocation4 [shape = 's32[2]{0}', space=sflag, size = 0x8, scoped, tag = 'scoped memory for conv_block_forward.5']
    #allocation5 [shape = 'u8[1024]{0}', space=vmem, size = 0x400, scoped, tag = 'input window, operand 1, single buffered']
    #allocation6 [shape = 's32[1]{0}', space=sflag, size = 0x4, scoped, tag = 'scoped memory for conv_block_forward.5']
    #allocation7 [shape = 'u8[8192]{0}', space=vmem, size = 0x2000, scoped, tag = 'output window, operand 0']
    %7 = vsyncpa [#allocation3], 0
    %s8 = scalar_lea.sflag [#allocation3], 1
    %9 = vsyncpa %s8, 0
    %10 = vsyncpa [#allocation6], 0
    %11 = vsyncpa [#allocation4], 0
    %s12 = scalar_lea.sflag [#allocation4], 1
    %13 = vsyncpa %s12, 0
    loop: start=0, step=1, limit=4
    $region2: #{conv_block_forward.5} parent=1 // loop_pre_header
      _
    $region3: #{conv_block_forward.5} parent=1 // loop_header
      %s15 = sphi 0, %s19
      %p16 = scmp.ge.s32.totalorder %s15, 4
      %s25 = sphi 0, %s27
      %s28 = sphi 0, %s25
      %s29 = sphi 0, %s28
      %s45 = sphi 0, %s29
      %s49 = sphi 0, %s49
      %s51 = sphi 0, %s49
      %s52 = sphi 0, %s51
      %s66 = sphi 0, %s52
      %s72 = sphi 0, %s74
      %s75 = sphi 0, %s72
      %s76 = sphi 0, %s75
      %s92 = sphi 0, %s76
    $region4: #{conv_block_forward.5} parent=1 // loop_header_branch
      %18 = sbr.rel (%p16) target = $region8
    $region5: #{conv_block_forward.5} parent=1 // loop_body
      %s20 = ssub.s32 %s15, 1
      %s21 = ssub.s32 %s15, 2
      %s22 = sadd.s32 %s15, 1
      %s23 = ssub.s32 %s15, %s22
      %p24 = scmp.eq.s32.totalorder %s23, 0
      %s26 = sadd.s32 %s25, 1
      %s27 = scalar_select %p24, %s25, %s26
      %p30 = pneg %p24
      %p31 = scmp.eq.s32.totalorder %s15, 1
      %p32 = por %p30, %p31
      %p33 = scmp.ne.s32.totalorder %s25, %s28
      %p34 = scmp.eq.s32.totalorder %s15, 0
      %p35 = por %p33, %p34
      %p36 = scmp.ne.s32.totalorder %s25, %s28
      %p37 = scmp.eq.s32.totalorder %s20, 1
      %p38 = por %p36, %p37
      %p39 = scmp.ne.s32.totalorder %s28, %s29
      %p40 = scmp.eq.s32.totalorder %s20, 0
      %p41 = por %p39, %p40
      %p42 = scmp.ne.s32.totalorder %s28, %s29
      %p43 = scmp.eq.s32.totalorder %s21, 1
      %p44 = por %p42, %p43
      %p46 = scmp.ne.s32.totalorder %s29, %s45
      %p47 = scmp.eq.s32.totalorder %s21, 0
      %p48 = por %p46, %p47
      %s50 = sadd.s32 %s49, 1
      %p53 = scmp.eq.s32.totalorder %s15, 1
      %p54 = scmp.ne.s32.totalorder %s49, %s51
      %p55 = scmp.eq.s32.totalorder %s15, 0
      %p56 = por %p54, %p55
      %p57 = scmp.ne.s32.totalorder %s49, %s51
      %p58 = scmp.eq.s32.totalorder %s20, 1
      %p59 = por %p57, %p58
      %p60 = scmp.ne.s32.totalorder %s51, %s52
      %p61 = scmp.eq.s32.totalorder %s20, 0
      %p62 = por %p60, %p61
      %p63 = scmp.ne.s32.totalorder %s51, %s52
      %p64 = scmp.eq.s32.totalorder %s21, 1
      %p65 = por %p63, %p64
      %p67 = scmp.ne.s32.totalorder %s52, %s66
      %p68 = scmp.eq.s32.totalorder %s21, 0
      %p69 = por %p67, %p68
      %s70 = ssub.s32 %s15, %s22
      %p71 = scmp.eq.s32.totalorder %s70, 0
      %s73 = sadd.s32 %s72, 1
      %s74 = scalar_select %p71, %s72, %s73
      %p77 = pneg %p71
      %p78 = scmp.eq.s32.totalorder %s15, 1
      %p79 = por %p77, %p78
      %p80 = scmp.ne.s32.totalorder %s72, %s75
      %p81 = scmp.eq.s32.totalorder %s15, 0
      %p82 = por %p80, %p81
      %p83 = scmp.ne.s32.totalorder %s72, %s75
      %p84 = scmp.eq.s32.totalorder %s20, 1
      %p85 = por %p83, %p84
      %p86 = scmp.ne.s32.totalorder %s75, %s76
      %p87 = scmp.eq.s32.totalorder %s20, 0
      %p88 = por %p86, %p87
      %p89 = scmp.ne.s32.totalorder %s75, %s76
      %p90 = scmp.eq.s32.totalorder %s21, 1
      %p91 = por %p89, %p90
      %p93 = scmp.ne.s32.totalorder %s76, %s92
      %p94 = scmp.eq.s32.totalorder %s21, 0
      %p95 = por %p93, %p94
      %p96 = scmp.le.s32.totalorder 1, %s15
      %p97 = scmp.lt.s32.totalorder %s15, 3
      %p98 = pnand %p96, %p97
      %p99 = pneg %p98
      // Predicated region
      $region9: #{conv_block_forward.5} parent=5 // pred_check
        _
      $region10: #{conv_block_forward.5} parent=5 // pred_check_branch
        %101 = sbr.rel (%p98) target = $region12
      $region11: #{conv_block_forward.5} parent=5 // pred_region
        %s102 = ssub.s32 %s15, 1
        // Predicated region
        $region13: #{conv_block_forward.5} parent=11 // pred_check
          %p103 = pneg %p62
        $region14: #{conv_block_forward.5} parent=11 // pred_check_branch
          %105 = sbr.rel (%p103) target = $region16
        $region15: #{conv_block_forward.5} parent=11 // pred_region
          %s107 = ssub.s32 32, 32
          %108 = vsyncadd [#allocation6], %s107
          %s110 = sshll.u32 [#allocation5], 4
          %s111 = int_to_ptr.vmem [resolvable:$true] %s110
          %113 = dma.hbm_to_vmem [thread:$0]  %s1, 32, %s111, [#allocation6]
        $region16: #{conv_block_forward.5} parent=11 // pred_fallthru
          _
      $region12: #{conv_block_forward.5} parent=5 // pred_fallthru
        _
      %p114 = scmp.lt.s32.totalorder %s15, 2
      // Predicated region
      $region17: #{conv_block_forward.5} parent=5 // pred_check
        %p115 = pneg %p114
      $region18: #{conv_block_forward.5} parent=5 // pred_check_branch
        %117 = sbr.rel (%p115) target = $region20
      $region19: #{conv_block_forward.5} parent=5 // pred_region
        // Predicated region
        $region21: #{conv_block_forward.5} parent=19 // pred_check
          %p118 = pneg %p35
        $region22: #{conv_block_forward.5} parent=19 // pred_check_branch
          %120 = sbr.rel (%p118) target = $region24
        $region23: #{conv_block_forward.5} parent=19 // pred_region
          %s121 = sand.u32 %s25, 1
          %s122 = scalar_lea.sflag [#allocation3], %s121
          %s123 = sand.u32 %s25, 1
          %s124 = smul.addr %s123, 8
          %s125 = scalar_lea.vmem [#allocation2], %s124
          %s127 = ssub.s32 128, 128
          %128 = vsyncadd %s122, %s127
          %s129 = smul.addr %s15, 128
          %s130 = scalar_lea.hbm %s0, %s129
          %s132 = sshll.u32 %s125, 4
          %s133 = int_to_ptr.vmem [resolvable:$true] %s132
          %135 = dma.hbm_to_vmem [thread:$0]  %s130, 128, %s133, %s122
        $region24: #{conv_block_forward.5} parent=19 // pred_fallthru
          _
      $region20: #{conv_block_forward.5} parent=5 // pred_fallthru
        _
      %p136 = scmp.le.s32.totalorder 1, %s15
      %p137 = scmp.lt.s32.totalorder %s15, 3
      %p138 = pnand %p136, %p137
      %p139 = pneg %p138
      // Predicated region
      $region25: #{conv_block_forward.5} parent=5 // pred_check
        _
      $region26: #{conv_block_forward.5} parent=5 // pred_check_branch
        %141 = sbr.rel (%p138) target = $region28
      $region27: #{conv_block_forward.5} parent=5 // pred_region
        %s142 = ssub.s32 %s15, 1
        %s143 = sand.u32 %s28, 1
        %s144 = scalar_lea.sflag [#allocation3], %s143
        %s145 = sand.u32 %s28, 1
        %s146 = smul.addr %s145, 8
        %s147 = scalar_lea.vmem [#allocation2], %s146
        // Predicated region
        $region29: #{conv_block_forward.5} parent=27 // pred_check
          %p148 = pneg %p41
        $region30: #{conv_block_forward.5} parent=27 // pred_check_branch
          %150 = sbr.rel (%p148) target = $region32
        $region31: #{conv_block_forward.5} parent=27 // pred_region
          %151 = dma.done %s144, 128
        $region32: #{conv_block_forward.5} parent=27 // pred_fallthru
          _
        // Predicated region
        $region33: #{conv_block_forward.5} parent=27 // pred_check
          %p152 = pneg %p62
        $region34: #{conv_block_forward.5} parent=27 // pred_check_branch
          %154 = sbr.rel (%p152) target = $region36
        $region35: #{conv_block_forward.5} parent=27 // pred_region
          %155 = dma.done [#allocation6], 32
        $region36: #{conv_block_forward.5} parent=27 // pred_fallthru
          _
        %s156 = sand.u32 %s28, 1
        %s157 = scalar_lea.sflag [#allocation3], %s156
        %s158 = sand.u32 %s28, 1
        %s159 = smul.addr %s158, 8
        %s160 = scalar_lea.vmem [#allocation2], %s159
        %p161 = pneg %p41
        %p162 = pneg %p38
        %p163 = pneg %p62
        %p164 = pneg %p59
        %p165 = pneg %p88
        %p166 = pneg %p85
        %s167 = sand.u32 %s75, 1
        %s168 = scalar_lea.sflag [#allocation4], %s167
        %s169 = sand.u32 %s75, 1
        %s170 = smul.addr %s169, 8
        %s171 = scalar_lea.vmem [#allocation7], %s170
        %v172 = vld [vmem:[%s147] sm:$0xff]
        %v173 = vld [vmem:[#allocation5] sm:$0x1]
        %v174 = vlaneseq
        %v175 = vshrl.u32 %v174, 7
        %v176 = vsub.s32 0, %v175
        %v177 = vrot.slane %v173, %v176
        %v178 = vmul.f32 %v172, %v177
        %v179 = vld [vmem:[#allocation5 + $0x1] sm:$0x1]
        %v180 = vlaneseq
        %v181 = vshrl.u32 %v180, 7
        %v182 = vsub.s32 0, %v181
        %v183 = vrot.slane %v179, %v182
        %v184 = vadd.f32 %v178, %v183
        %v185 = vmul.f32 %v184, 0.5
        %v186 = vmul.f32 %v184, 0.70710677
        %v187 = verf.f32.pop %v186
        %v188 = vadd.f32 %v187, 1.0
        %v189 = vmul.f32 %v185, %v188
        %190 = vst [vmem:[%s171] sm:$0xff] %v189
        %s191 = sand.u32 %s75, 1
        %s192 = scalar_lea.sflag [#allocation4], %s191
        %s193 = sand.u32 %s75, 1
        %s194 = smul.addr %s193, 8
        %s195 = scalar_lea.vmem [#allocation7], %s194
        // Predicated region
        $region37: #{conv_block_forward.5} parent=27 // pred_check
          %p196 = pneg %p85
        $region38: #{conv_block_forward.5} parent=27 // pred_check_branch
          %198 = sbr.rel (%p196) target = $region40
        $region39: #{conv_block_forward.5} parent=27 // pred_region
          %s200 = ssub.s32 128, 128
          %201 = vsyncadd %s192, %s200
          %s202 = smul.addr %s20, 128
          %s203 = scalar_lea.hbm %s2, %s202
          %s205 = sshll.u32 %s195, 4
          %s206 = int_to_ptr.vmem [resolvable:$true] %s205
          %208 = dma.vmem_to_hbm [thread:$0]  %s206, 128, %s203, %s192
        $region40: #{conv_block_forward.5} parent=27 // pred_fallthru
          _
      $region28: #{conv_block_forward.5} parent=5 // pred_fallthru
        _
      %p209 = scmp.le.s32.totalorder 2, %s15
      // Predicated region
      $region41: #{conv_block_forward.5} parent=5 // pred_check
        %p210 = pneg %p209
      $region42: #{conv_block_forward.5} parent=5 // pred_check_branch
        %212 = sbr.rel (%p210) target = $region44
      $region43: #{conv_block_forward.5} parent=5 // pred_region
        %s213 = ssub.s32 %s15, 2
        // Predicated region
        $region45: #{conv_block_forward.5} parent=43 // pred_check
          %p214 = pneg %p91
        $region46: #{conv_block_forward.5} parent=43 // pred_check_branch
          %216 = sbr.rel (%p214) target = $region48
        $region47: #{conv_block_forward.5} parent=43 // pred_region
          %s217 = sand.u32 %s76, 1
          %s218 = scalar_lea.sflag [#allocation4], %s217
          %s219 = sand.u32 %s76, 1
          %s220 = smul.addr %s219, 8
          %s221 = scalar_lea.vmem [#allocation7], %s220
          %222 = dma.done %s218, 128
        $region48: #{conv_block_forward.5} parent=43 // pred_fallthru
          _
      $region44: #{conv_block_forward.5} parent=5 // pred_fallthru
        _
    $region6: #{conv_block_forward.5} parent=1 // loop_footer
      %s19 = sadd.s32 1, %s15
    $region7: #{conv_block_forward.5} parent=1 // loop_footer_branch
      %14 = sbr.rel target = $region3
    $region8: #{conv_block_forward.5} parent=1 // loop_exit
      _
    %223 = vsyncpa [#allocation3], 1
    %s224 = scalar_lea.sflag [#allocation3], 1
    %225 = vsyncpa %s224, 1
    %226 = vsyncpa [#allocation6], 1
    %227 = vsyncpa [#allocation4], 1
    %s228 = scalar_lea.sflag [#allocation4], 1
    %229 = vsyncpa %s228, 1

// kernel: conv_block_forward.4
$region0: #{conv_block_forward.4}
  #allocation0 [shape = 'u32[]', space=smem, size = 0x4, offset = 0x4, fixed_abs, tag = 'smem constant byte address 0x4 - core index']
  #allocation1 [shape = 'u32[144,128]{1,0:T(1,128)}', space=vmem, size = 0x12000, scoped, tag = 'internal scratch']
  #allocation2 [shape = 'f32[2,128]{1,0:T(2,128)}', space=vmem, size = 0x400, scoped, tag = 'scratch operand']
  #allocation3 [shape = 'f32[18,128]{1,0:T(8,128)}', space=vmem, size = 0x3000, scoped, tag = 'scratch operand']
  %s0 = inlined_call_operand.hbm [shape: f32[2,16,128], index: 0, kind: input, shape index: {}]
  %s1 = inlined_call_operand.hbm [shape: f32[2,18,128], index: 1, kind: input, shape index: {}]
  %s2 = inlined_call_operand.hbm [shape: f32[2,128], index: 2, kind: input, shape index: {}]
  %s3 = inlined_call_operand.hbm [shape: f32[128,128], index: 3, kind: input, shape index: {}]
  %s4 = inlined_call_operand.hbm [shape: f32[1,128], index: 4, kind: input, shape index: {}]
  %s5 = inlined_call_operand.hbm [shape: f32[512,128], index: 5, kind: input, shape index: {}]
  %s6 = inlined_call_operand.hbm [shape: f32[2,8,128], index: 6, kind: output, shape index: {0}]
  %s7 = inlined_call_operand.hbm [shape: f32[2,128], index: 7, kind: output, shape index: {1}]
  %8 = xla_tuple %s6, %s7
  %s9 = sld [smem:[#allocation0]]
  $region101: #{conv_block_forward.4} parent=0
    _
  %s11 = ssub.s32 1, %s9
  %s12 = scalar_select 0, %s11, %s9
  $region1: #{conv_block_forward.4} parent=0
    #allocation4 [shape = 'u8[16384]{0}', space=vmem, size = 0x4000, scoped, tag = 'input window, operand 0']
    #allocation5 [shape = 's32[2]{0}', space=sflag, size = 0x8, scoped, tag = 'scoped memory for conv_block_forward.4']
    #allocation6 [shape = 's32[2]{0}', space=sflag, size = 0x8, scoped, tag = 'scoped memory for conv_block_forward.4']
    #allocation7 [shape = 'u8[24576]{0}', space=vmem, size = 0x6000, scoped, tag = 'input window, operand 1']
    #allocation8 [shape = 's32[2]{0}', space=sflag, size = 0x8, scoped, tag = 'scoped memory for conv_block_forward.4']
    #allocation9 [shape = 'u8[1024]{0}', space=vmem, size = 0x400, scoped, tag = 'input window, operand 2, single buffered']
    #allocation10 [shape = 'u8[65536]{0}', space=vmem, size = 0x10000, scoped, tag = 'input window, operand 3, single buffered']
    #allocation11 [shape = 's32[1]{0}', space=sflag, size = 0x4, scoped, tag = 'scoped memory for conv_block_forward.4']
    #allocation12 [shape = 'u8[512]{0}', space=vmem, size = 0x400, scoped, tag = 'input window, operand 4, single buffered']
    #allocation13 [shape = 'u8[262144]{0}', space=vmem, size = 0x40000, scoped, tag = 'input window, operand 5, single buffered']
    #allocation14 [shape = 's32[1]{0}', space=sflag, size = 0x4, scoped, tag = 'scoped memory for conv_block_forward.4']
    #allocation15 [shape = 'u8[8192]{0}', space=vmem, size = 0x2000, scoped, tag = 'output window, operand 0']
    #allocation16 [shape = 'u8[1024]{0}', space=vmem, size = 0x400, scoped, tag = 'output window, operand 1, single buffered']
    #allocation17 [shape = 's32[1]{0}', space=sflag, size = 0x4, scoped, tag = 'scoped memory for conv_block_forward.4']
    %13 = vsyncpa [#allocation5], 0
    %s14 = scalar_lea.sflag [#allocation5], 1
    %15 = vsyncpa %s14, 0
    %16 = vsyncpa [#allocation8], 0
    %s17 = scalar_lea.sflag [#allocation8], 1
    %18 = vsyncpa %s17, 0
    %19 = vsyncpa [#allocation11], 0
    %20 = vsyncpa [#allocation14], 0
    %21 = vsyncpa [#allocation6], 0
    %s22 = scalar_lea.sflag [#allocation6], 1
    %23 = vsyncpa %s22, 0
    %24 = vsyncpa [#allocation17], 0
    loop: start=0, step=1, limit=4
    $region2: #{conv_block_forward.4} parent=1 // loop_pre_header
      _
    $region3: #{conv_block_forward.4} parent=1 // loop_header
      %s26 = sphi 0, %s30
      %p27 = scmp.ge.s32.totalorder %s26, 4
      %s36 = sphi 0, %s38
      %s39 = sphi 0, %s36
      %s40 = sphi 0, %s39
      %s56 = sphi 0, %s40
      %s62 = sphi 0, %s64
      %s65 = sphi 0, %s62
      %s66 = sphi 0, %s65
      %s82 = sphi 0, %s66
      %s86 = sphi 0, %s86
      %s88 = sphi 0, %s86
      %s89 = sphi 0, %s88
      %s103 = sphi 0, %s89
      %s107 = sphi 0, %s107
      %s109 = sphi 0, %s107
      %s110 = sphi 0, %s109
      %s124 = sphi 0, %s110
      %s128 = sphi 0, %s128
      %s130 = sphi 0, %s128
      %s131 = sphi 0, %s130
      %s145 = sphi 0, %s131
      %s149 = sphi 0, %s149
      %s151 = sphi 0, %s149
      %s152 = sphi 0, %s151
      %s166 = sphi 0, %s152
      %s172 = sphi 0, %s174
      %s175 = sphi 0, %s172
      %s176 = sphi 0, %s175
      %s192 = sphi 0, %s176
      %s196 = sphi 0, %s196
      %s198 = sphi 0, %s196
      %s199 = sphi 0, %s198
      %s213 = sphi 0, %s199
    $region4: #{conv_block_forward.4} parent=1 // loop_header_branch
      %29 = sbr.rel (%p27) target = $region8
    $region5: #{conv_block_forward.4} parent=1 // loop_body
      %s31 = ssub.s32 %s26, 1
      %s32 = ssub.s32 %s26, 2
      %s33 = sadd.s32 %s26, 1
      %s34 = ssub.s32 %s26, %s33
      %p35 = scmp.eq.s32.totalorder %s34, 0
      %s37 = sadd.s32 %s36, 1
      %s38 = scalar_select %p35, %s36, %s37
      %p41 = pneg %p35
      %p42 = scmp.eq.s32.totalorder %s26, 1
      %p43 = por %p41, %p42
      %p44 = scmp.ne.s32.totalorder %s36, %s39
      %p45 = scmp.eq.s32.totalorder %s26, 0
      %p46 = por %p44, %p45
      %p47 = scmp.ne.s32.totalorder %s36, %s39
      %p48 = scmp.eq.s32.totalorder %s31, 1
      %p49 = por %p47, %p48
      %p50 = scmp.ne.s32.totalorder %s39, %s40
      %p51 = scmp.eq.s32.totalorder %s31, 0
      %p52 = por %p50, %p51
      %p53 = scmp.ne.s32.totalorder %s39, %s40
      %p54 = scmp.eq.s32.totalorder %s32, 1
      %p55 = por %p53, %p54
      %p57 = scmp.ne.s32.totalorder %s40, %s56
      %p58 = scmp.eq.s32.totalorder %s32, 0
      %p59 = por %p57, %p58
      %s60 = ssub.s32 %s26, %s33
      %p61 = scmp.eq.s32.totalorder %s60, 0
      %s63 = sadd.s32 %s62, 1
      %s64 = scalar_select %p61, %s62, %s63
      %p67 = pneg %p61
      %p68 = scmp.eq.s32.totalorder %s26, 1
      %p69 = por %p67, %p68
      %p70 = scmp.ne.s32.totalorder %s62, %s65
      %p71 = scmp.eq.s32.totalorder %s26, 0
      %p72 = por %p70, %p71
      %p73 = scmp.ne.s32.totalorder %s62, %s65
      %p74 = scmp.eq.s32.totalorder %s31, 1
      %p75 = por %p73, %p74
      %p76 = scmp.ne.s32.totalorder %s65, %s66
      %p77 = scmp.eq.s32.totalorder %s31, 0
      %p78 = por %p76, %p77
      %p79 = scmp.ne.s32.totalorder %s65, %s66
      %p80 = scmp.eq.s32.totalorder %s32, 1
      %p81 = por %p79, %p80
      %p83 = scmp.ne.s32.totalorder %s66, %s82
      %p84 = scmp.eq.s32.totalorder %s32, 0
      %p85 = por %p83, %p84
      %s87 = sadd.s32 %s86, 1
      %p90 = scmp.eq.s32.totalorder %s26, 1
      %p91 = scmp.ne.s32.totalorder %s86, %s88
      %p92 = scmp.eq.s32.totalorder %s26, 0
      %p93 = por %p91, %p92
      %p94 = scmp.ne.s32.totalorder %s86, %s88
      %p95 = scmp.eq.s32.totalorder %s31, 1
      %p96 = por %p94, %p95
      %p97 = scmp.ne.s32.totalorder %s88, %s89
      %p98 = scmp.eq.s32.totalorder %s31, 0
      %p99 = por %p97, %p98
      %p100 = scmp.ne.s32.totalorder %s88, %s89
      %p101 = scmp.eq.s32.totalorder %s32, 1
      %p102 = por %p100, %p101
      %p104 = scmp.ne.s32.totalorder %s89, %s103
      %p105 = scmp.eq.s32.totalorder %s32, 0
      %p106 = por %p104, %p105
      %s108 = sadd.s32 %s107, 1
      %p111 = scmp.eq.s32.totalorder %s26, 1
      %p112 = scmp.ne.s32.totalorder %s107, %s109
      %p113 = scmp.eq.s32.totalorder %s26, 0
      %p114 = por %p112, %p113
      %p115 = scmp.ne.s32.totalorder %s107, %s109
      %p116 = scmp.eq.s32.totalorder %s31, 1
      %p117 = por %p115, %p116
      %p118 = scmp.ne.s32.totalorder %s109, %s110
      %p119 = scmp.eq.s32.totalorder %s31, 0
      %p120 = por %p118, %p119
      %p121 = scmp.ne.s32.totalorder %s109, %s110
      %p122 = scmp.eq.s32.totalorder %s32, 1
      %p123 = por %p121, %p122
      %p125 = scmp.ne.s32.totalorder %s110, %s124
      %p126 = scmp.eq.s32.totalorder %s32, 0
      %p127 = por %p125, %p126
      %s129 = sadd.s32 %s128, 1
      %p132 = scmp.eq.s32.totalorder %s26, 1
      %p133 = scmp.ne.s32.totalorder %s128, %s130
      %p134 = scmp.eq.s32.totalorder %s26, 0
      %p135 = por %p133, %p134
      %p136 = scmp.ne.s32.totalorder %s128, %s130
      %p137 = scmp.eq.s32.totalorder %s31, 1
      %p138 = por %p136, %p137
      %p139 = scmp.ne.s32.totalorder %s130, %s131
      %p140 = scmp.eq.s32.totalorder %s31, 0
      %p141 = por %p139, %p140
      %p142 = scmp.ne.s32.totalorder %s130, %s131
      %p143 = scmp.eq.s32.totalorder %s32, 1
      %p144 = por %p142, %p143
      %p146 = scmp.ne.s32.totalorder %s131, %s145
      %p147 = scmp.eq.s32.totalorder %s32, 0
      %p148 = por %p146, %p147
      %s150 = sadd.s32 %s149, 1
      %p153 = scmp.eq.s32.totalorder %s26, 1
      %p154 = scmp.ne.s32.totalorder %s149, %s151
      %p155 = scmp.eq.s32.totalorder %s26, 0
      %p156 = por %p154, %p155
      %p157 = scmp.ne.s32.totalorder %s149, %s151
      %p158 = scmp.eq.s32.totalorder %s31, 1
      %p159 = por %p157, %p158
      %p160 = scmp.ne.s32.totalorder %s151, %s152
      %p161 = scmp.eq.s32.totalorder %s31, 0
      %p162 = por %p160, %p161
      %p163 = scmp.ne.s32.totalorder %s151, %s152
      %p164 = scmp.eq.s32.totalorder %s32, 1
      %p165 = por %p163, %p164
      %p167 = scmp.ne.s32.totalorder %s152, %s166
      %p168 = scmp.eq.s32.totalorder %s32, 0
      %p169 = por %p167, %p168
      %s170 = ssub.s32 %s26, %s33
      %p171 = scmp.eq.s32.totalorder %s170, 0
      %s173 = sadd.s32 %s172, 1
      %s174 = scalar_select %p171, %s172, %s173
      %p177 = pneg %p171
      %p178 = scmp.eq.s32.totalorder %s26, 1
      %p179 = por %p177, %p178
      %p180 = scmp.ne.s32.totalorder %s172, %s175
      %p181 = scmp.eq.s32.totalorder %s26, 0
      %p182 = por %p180, %p181
      %p183 = scmp.ne.s32.totalorder %s172, %s175
      %p184 = scmp.eq.s32.totalorder %s31, 1
      %p185 = por %p183, %p184
      %p186 = scmp.ne.s32.totalorder %s175, %s176
      %p187 = scmp.eq.s32.totalorder %s31, 0
      %p188 = por %p186, %p187
      %p189 = scmp.ne.s32.totalorder %s175, %s176
      %p190 = scmp.eq.s32.totalorder %s32, 1
      %p191 = por %p189, %p190
      %p193 = scmp.ne.s32.totalorder %s176, %s192
      %p194 = scmp.eq.s32.totalorder %s32, 0
      %p195 = por %p193, %p194
      %s197 = sadd.s32 %s196, 1
      %p200 = scmp.eq.s32.totalorder %s26, 1
      %p201 = scmp.ne.s32.totalorder %s196, %s198
      %p202 = scmp.eq.s32.totalorder %s26, 0
      %p203 = por %p201, %p202
      %p204 = scmp.ne.s32.totalorder %s196, %s198
      %p205 = scmp.eq.s32.totalorder %s31, 1
      %p206 = por %p204, %p205
      %p207 = scmp.ne.s32.totalorder %s198, %s199
      %p208 = scmp.eq.s32.totalorder %s31, 0
      %p209 = por %p207, %p208
      %p210 = scmp.ne.s32.totalorder %s198, %s199
      %p211 = scmp.eq.s32.totalorder %s32, 1
      %p212 = por %p210, %p211
      %p214 = scmp.ne.s32.totalorder %s199, %s213
      %p215 = scmp.eq.s32.totalorder %s32, 0
      %p216 = por %p214, %p215
      %p217 = scmp.le.s32.totalorder 1, %s26
      %p218 = scmp.lt.s32.totalorder %s26, 3
      %p219 = pnand %p217, %p218
      %p220 = pneg %p219
      // Predicated region
      $region9: #{conv_block_forward.4} parent=5 // pred_check
        _
      $region10: #{conv_block_forward.4} parent=5 // pred_check_branch
        %222 = sbr.rel (%p219) target = $region12
      $region11: #{conv_block_forward.4} parent=5 // pred_region
        %s223 = ssub.s32 %s26, 1
        // Predicated region
        $region13: #{conv_block_forward.4} parent=11 // pred_check
          %p224 = pneg %p99
        $region14: #{conv_block_forward.4} parent=11 // pred_check_branch
          %226 = sbr.rel (%p224) target = $region16
        $region15: #{conv_block_forward.4} parent=11 // pred_region
          %s228 = ssub.s32 32, 32
          %229 = vsyncadd [#allocation8], %s228
          %s231 = sshll.u32 [#allocation9], 4
          %s232 = int_to_ptr.vmem [resolvable:$true] %s231
          %234 = dma.hbm_to_vmem [thread:$0]  %s2, 32, %s232, [#allocation8]
        $region16: #{conv_block_forward.4} parent=11 // pred_fallthru
          _
        // Predicated region
        $region17: #{conv_block_forward.4} parent=11 // pred_check
          %p235 = pneg %p120
        $region18: #{conv_block_forward.4} parent=11 // pred_check_branch
          %237 = sbr.rel (%p235) target = $region20
        $region19: #{conv_block_forward.4} parent=11 // pred_region
          %s239 = ssub.s32 2048, 2048
          %240 = vsyncadd [#allocation11], %s239
          %s241 = sshll.u32 [#allocation10], 4
          %s242 = int_to_ptr.vmem [resolvable:$true] %s241
          %247 = dma.hbm_to_vmem [thread:$0]  %s3, 2048, %s242, [#allocation11], 128, 128, 8
        $region20: #{conv_block_forward.4} parent=11 // pred_fallthru
          _
        // Predicated region
        $region21: #{conv_block_forward.4} parent=11 // pred_check
          %p248 = pneg %p141
        $region22: #{conv_block_forward.4} parent=11 // pred_check_branch
          %250 = sbr.rel (%p248) target = $region24
        $region23: #{conv_block_forward.4} parent=11 // pred_region
          %s252 = ssub.s32 16, 16
          %253 = vsyncadd [#allocation11], %s252
          %s255 = sshll.u32 [#allocation12], 4
          %s256 = int_to_ptr.vmem [resolvable:$true] %s255
          %258 = dma.hbm_to_vmem [thread:$0]  %s4, 16, %s256, [#allocation11]
        $region24: #{conv_block_forward.4} parent=11 // pred_fallthru
          _
        // Predicated region
        $region25: #{conv_block_forward.4} parent=11 // pred_check
          %p259 = pneg %p162
        $region26: #{conv_block_forward.4} parent=11 // pred_check_branch
          %261 = sbr.rel (%p259) target = $region28
        $region27: #{conv_block_forward.4} parent=11 // pred_region
          %s263 = ssub.s32 8192, 8192
          %264 = vsyncadd [#allocation14], %s263
          %s265 = sshll.u32 [#allocation13], 4
          %s266 = int_to_ptr.vmem [resolvable:$true] %s265
          %271 = dma.hbm_to_vmem [thread:$0]  %s5, 8192, %s266, [#allocation14], 128, 128, 8
        $region28: #{conv_block_forward.4} parent=11 // pred_fallthru
          _
      $region12: #{conv_block_forward.4} parent=5 // pred_fallthru
        _
      %p272 = scmp.lt.s32.totalorder %s26, 2
      // Predicated region
      $region29: #{conv_block_forward.4} parent=5 // pred_check
        %p273 = pneg %p272
      $region30: #{conv_block_forward.4} parent=5 // pred_check_branch
        %275 = sbr.rel (%p273) target = $region32
      $region31: #{conv_block_forward.4} parent=5 // pred_region
        // Predicated region
        $region33: #{conv_block_forward.4} parent=31 // pred_check
          %p276 = pneg %p46
        $region34: #{conv_block_forward.4} parent=31 // pred_check_branch
          %278 = sbr.rel (%p276) target = $region36
        $region35: #{conv_block_forward.4} parent=31 // pred_region
          %s279 = sand.u32 %s36, 1
          %s280 = scalar_lea.sflag [#allocation5], %s279
          %s281 = sand.u32 %s36, 1
          %s282 = smul.addr %s281, 16
          %s283 = scalar_lea.vmem [#allocation4], %s282
          %s285 = ssub.s32 256, 256
          %286 = vsyncadd %s280, %s285
          %s287 = smul.addr %s26, 2
          %s288 = smul.addr %s287, 128
          %s289 = scalar_lea.hbm %s0, %s288
          %s290 = sshll.u32 %s283, 4
          %s291 = int_to_ptr.vmem [resolvable:$true] %s290
          %296 = dma.hbm_to_vmem [thread:$0]  %s289, 256, %s291, %s280, 128, 128, 8
        $region36: #{conv_block_forward.4} parent=31 // pred_fallthru
          _
        // Predicated region
        $region37: #{conv_block_forward.4} parent=31 // pred_check
          %p297 = pneg %p72
        $region38: #{conv_block_forward.4} parent=31 // pred_check_branch
          %299 = sbr.rel (%p297) target = $region40
        $region39: #{conv_block_forward.4} parent=31 // pred_region
          %s300 = sand.u32 %s26, 1
          %s301 = scalar_lea.sflag [#allocation8], %s300
          %s302 = sand.u32 %s62, 1
          %s303 = smul.addr %s302, 24
          %s304 = scalar_lea.vmem [#allocation7], %s303
          %s306 = ssub.s32 384, 384
          %307 = vsyncadd %s301, %s306
          %s308 = smul.addr %s26, 3
          %s309 = smul.addr %s308, 128
          %s310 = scalar_lea.hbm %s1, %s309
          %s311 = sshll.u32 %s304, 4
          %s312 = int_to_ptr.vmem [resolvable:$true] %s311
          %317 = dma.hbm_to_vmem [thread:$0]  %s310, 384, %s312, %s301, 128, 128, 8
        $region40: #{conv_block_forward.4} parent=31 // pred_fallthru
          _
      $region32: #{conv_block_forward.4} parent=5 // pred_fallthru
        _
      %p318 = scmp.le.s32.totalorder 1, %s26
      %p319 = scmp.lt.s32.totalorder %s26, 3
      %p320 = pnand %p318, %p319
      %p321 = pneg %p320
      // Predicated region
      $region41: #{conv_block_forward.4} parent=5 // pred_check
        _
      $region42: #{conv_block_forward.4} parent=5 // pred_check_branch
        %323 = sbr.rel (%p320) target = $region44
      $region43: #{conv_block_forward.4} parent=5 // pred_region
        %s324 = ssub.s32 %s26, 1
        %s325 = sand.u32 %s39, 1
        %s326 = scalar_lea.sflag [#allocation5], %s325
        %s327 = sand.u32 %s39, 1
        %s328 = smul.addr %s327, 16
        %s329 = scalar_lea.vmem [#allocation4], %s328
        // Predicated region
        $region45: #{conv_block_forward.4} parent=43 // pred_check
          %p330 = pneg %p52
        $region46: #{conv_block_forward.4} parent=43 // pred_check_branch
          %332 = sbr.rel (%p330) target = $region48
        $region47: #{conv_block_forward.4} parent=43 // pred_region
          %333 = dma.done %s326, 256
        $region48: #{conv_block_forward.4} parent=43 // pred_fallthru
          _
        %s334 = sand.u32 %s31, 1
        %s335 = scalar_lea.sflag [#allocation8], %s334
        %s336 = sand.u32 %s65, 1
        %s337 = smul.addr %s336, 24
        %s338 = scalar_lea.vmem [#allocation7], %s337
        // Predicated region
        $region49: #{conv_block_forward.4} parent=43 // pred_check
          %p339 = pneg %p78
        $region50: #{conv_block_forward.4} parent=43 // pred_check_branch
          %341 = sbr.rel (%p339) target = $region52
        $region51: #{conv_block_forward.4} parent=43 // pred_region
          %342 = dma.done %s335, 384
        $region52: #{conv_block_forward.4} parent=43 // pred_fallthru
          _
        // Predicated region
        $region53: #{conv_block_forward.4} parent=43 // pred_check
          %p343 = pneg %p99
        $region54: #{conv_block_forward.4} parent=43 // pred_check_branch
          %345 = sbr.rel (%p343) target = $region56
        $region55: #{conv_block_forward.4} parent=43 // pred_region
          %346 = dma.done [#allocation8], 32
        $region56: #{conv_block_forward.4} parent=43 // pred_fallthru
          _
        // Predicated region
        $region57: #{conv_block_forward.4} parent=43 // pred_check
          %p347 = pneg %p120
        $region58: #{conv_block_forward.4} parent=43 // pred_check_branch
          %349 = sbr.rel (%p347) target = $region60
        $region59: #{conv_block_forward.4} parent=43 // pred_region
          %350 = dma.done [#allocation11], 2048
        $region60: #{conv_block_forward.4} parent=43 // pred_fallthru
          _
        // Predicated region
        $region61: #{conv_block_forward.4} parent=43 // pred_check
          %p351 = pneg %p141
        $region62: #{conv_block_forward.4} parent=43 // pred_check_branch
          %353 = sbr.rel (%p351) target = $region64
        $region63: #{conv_block_forward.4} parent=43 // pred_region
          %354 = dma.done [#allocation11], 16
        $region64: #{conv_block_forward.4} parent=43 // pred_fallthru
          _
        // Predicated region
        $region65: #{conv_block_forward.4} parent=43 // pred_check
          %p355 = pneg %p162
        $region66: #{conv_block_forward.4} parent=43 // pred_check_branch
          %357 = sbr.rel (%p355) target = $region68
        $region67: #{conv_block_forward.4} parent=43 // pred_region
          %358 = dma.done [#allocation14], 8192
        $region68: #{conv_block_forward.4} parent=43 // pred_fallthru
          _
        %s359 = sand.u32 %s39, 1
        %s360 = scalar_lea.sflag [#allocation5], %s359
        %s361 = sand.u32 %s39, 1
        %s362 = smul.addr %s361, 16
        %s363 = scalar_lea.vmem [#allocation4], %s362
        %p364 = pneg %p52
        %p365 = pneg %p49
        %s366 = sand.u32 %s31, 1
        %s367 = scalar_lea.sflag [#allocation8], %s366
        %s368 = sand.u32 %s65, 1
        %s369 = smul.addr %s368, 24
        %s370 = scalar_lea.vmem [#allocation7], %s369
        %p371 = pneg %p78
        %p372 = pneg %p75
        %p373 = pneg %p99
        %p374 = pneg %p96
        %p375 = pneg %p120
        %p376 = pneg %p117
        %p377 = pneg %p141
        %p378 = pneg %p138
        %p379 = pneg %p162
        %p380 = pneg %p159
        %p381 = pneg %p188
        %p382 = pneg %p185
        %s383 = sand.u32 %s175, 1
        %s384 = scalar_lea.sflag [#allocation6], %s383
        %s385 = sand.u32 %s175, 1
        %s386 = smul.addr %s385, 8
        %s387 = scalar_lea.vmem [#allocation15], %s386
        %p388 = pneg %p209
        %p389 = pneg %p206
        %v390 = vld [vmem:[%s329] sm:$0xff]
        %v391 = vld [vmem:[%s329 + $0x8] sm:$0xff]
        %v392 = vld [vmem:[#allocation9] sm:$0x1]
        %v393 = vlaneseq
        %v394 = vshrl.u32 %v393, 7
        %v395 = vsub.s32 0, %v394
        %v396 = vrot.slane %v392, %v395
        %v397 = vmul.f32 %v390, %v396
        %v398 = vmul.f32 %v391, %v396
        %v399 = vld [vmem:[#allocation9 + $0x1] sm:$0x1]
        %v400 = vlaneseq
        %v401 = vshrl.u32 %v400, 7
        %v402 = vsub.s32 0, %v401
        %v403 = vrot.slane %v399, %v402
        %v404 = vadd.f32 %v397, %v403
        %v405 = vadd.f32 %v398, %v403
        %v406 = vmul.f32 %v404, 0.5
        %v407 = vmul.f32 %v405, 0.5
        %v408 = vmul.f32 %v404, 0.70710677
        %v409 = vmul.f32 %v405, 0.70710677
        %v410 = verf.f32.pop %v408
        %v411 = verf.f32.pop %v409
        %v412 = vadd.f32 %v410, 1.0
        %v413 = vadd.f32 %v411, 1.0
        %v414 = vmul.f32 %v406, %v412
        %v415 = vmul.f32 %v407, %v413
        %v416 = vld [vmem:[%s338 + $0x1] sm:$0xff]
        %v417 = vld [vmem:[%s338 + $0x9] sm:$0xff]
        %v418 = vld [vmem:[#allocation10] sm:$0xff]
        %v419 = vld [vmem:[#allocation10 + $0x8] sm:$0xff]
        %v420 = vld [vmem:[#allocation10 + $0x10] sm:$0xff]
        %v421 = vld [vmem:[#allocation10 + $0x18] sm:$0xff]
        %v422 = vld [vmem:[#allocation10 + $0x20] sm:$0xff]
        %v423 = vld [vmem:[#allocation10 + $0x28] sm:$0xff]
        %v424 = vld [vmem:[#allocation10 + $0x30] sm:$0xff]
        %v425 = vld [vmem:[#allocation10 + $0x38] sm:$0xff]
        %v426 = vld [vmem:[#allocation10 + $0x40] sm:$0xff]
        %v427 = vld [vmem:[#allocation10 + $0x48] sm:$0xff]
        %v428 = vld [vmem:[#allocation10 + $0x50] sm:$0xff]
        %v429 = vld [vmem:[#allocation10 + $0x58] sm:$0xff]
        %v430 = vld [vmem:[#allocation10 + $0x60] sm:$0xff]
        %v431 = vld [vmem:[#allocation10 + $0x68] sm:$0xff]
        %v432 = vld [vmem:[#allocation10 + $0x70] sm:$0xff]
        %v433 = vld [vmem:[#allocation10 + $0x78] sm:$0xff]
        %434 = vmatprep.subr.mxu0 0.0
        %435 = vmatpush1.msra.mxu0 %v418
        %436 = vmatprep.subr.mxu0 0.0
        %437 = vmatpush1.msra.mxu0 %v419
        %438 = vmatprep.subr.mxu0 0.0
        %439 = vmatpush1.msra.mxu0 %v420
        %440 = vmatprep.subr.mxu0 0.0
        %441 = vmatpush1.msra.mxu0 %v421
        %442 = vmatprep.subr.mxu0 0.0
        %443 = vmatpush1.msra.mxu0 %v422
        %444 = vmatprep.subr.mxu0 0.0
        %445 = vmatpush1.msra.mxu0 %v423
        %446 = vmatprep.subr.mxu0 0.0
        %447 = vmatpush1.msra.mxu0 %v424
        %448 = vmatprep.subr.mxu0 0.0
        %449 = vmatpush1.msra.mxu0 %v425
        %450 = vmatprep.subr.mxu0 0.0
        %451 = vmatpush1.msra.mxu0 %v426
        %452 = vmatprep.subr.mxu0 0.0
        %453 = vmatpush1.msra.mxu0 %v427
        %454 = vmatprep.subr.mxu0 0.0
        %455 = vmatpush1.msra.mxu0 %v428
        %456 = vmatprep.subr.mxu0 0.0
        %457 = vmatpush1.msra.mxu0 %v429
        %458 = vmatprep.subr.mxu0 0.0
        %459 = vmatpush1.msra.mxu0 %v430
        %460 = vmatprep.subr.mxu0 0.0
        %461 = vmatpush1.msra.mxu0 %v431
        %462 = vmatprep.subr.mxu0 0.0
        %463 = vmatpush1.msra.mxu0 %v432
        %464 = vmatprep.subr.mxu0 0.0
        %465 = vmatpush1.msra.mxu0 %v433
        %466 = vmatprep.subr.mxu0 0.0
        %467 = vmatpush1.msra.mxu0 0.0
        %468 = vmatprep.subr.mxu0 0.0
        %469 = vmatpush1.msra.mxu0 0.0
        %470 = vmatprep.subr.mxu0 0.0
        %471 = vmatpush1.msra.mxu0 0.0
        %472 = vmatprep.subr.mxu0 0.0
        %473 = vmatpush1.msra.mxu0 0.0
        %474 = vmatprep.subr.mxu0 0.0
        %475 = vmatpush1.msra.mxu0 0.0
        %476 = vmatprep.subr.mxu0 0.0
        %477 = vmatpush1.msra.mxu0 0.0
        %478 = vmatprep.subr.mxu0 0.0
        %479 = vmatpush1.msra.mxu0 0.0
        %480 = vmatprep.subr.mxu0 0.0
        %481 = vmatpush1.msra.mxu0 0.0
        %482 = vmatprep.subr.mxu0 0.0
        %483 = vmatpush1.msra.mxu0 0.0
        %484 = vmatprep.subr.mxu0 0.0
        %485 = vmatpush1.msra.mxu0 0.0
        %486 = vmatprep.subr.mxu0 0.0
        %487 = vmatpush1.msra.mxu0 0.0
        %488 = vmatprep.subr.mxu0 0.0
        %489 = vmatpush1.msra.mxu0 0.0
        %490 = vmatprep.subr.mxu0 0.0
        %491 = vmatpush1.msra.mxu0 0.0
        %492 = vmatprep.subr.mxu0 0.0
        %493 = vmatpush1.msra.mxu0 0.0
        %494 = vmatprep.subr.mxu0 0.0
        %495 = vmatpush1.msra.mxu0 0.0
        %496 = vmatprep.subr.mxu0 0.0
        %497 = vmatpush1.msra.mxu0 0.0
        %498 = vmatprep.mubr.f32.mxu0 0.0
        %499 = vmatmul.mubr.f32.gmra.mrb[0].mxu0 %v416
        %v500 = vpop.f32.mrb[0].mxu0
        %v501 = vadd.f32 0.0, %v500
        %v502 = vpop.f32.mrb[0].mxu0
        %503 = vmatprep.mubr.f32.mxu0 0.0
        %504 = vmatmul.mubr.f32.gmra.mrb[0].mxu0 %v417
        %v505 = vpop.f32.mrb[0].mxu0
        %v506 = vadd.f32 0.0, %v505
        %v507 = vpop.f32.mrb[0].mxu0
        %508 = vdwg.mxu0
        %v509 = vadd.f32 %v414, %v501
        %v510 = vadd.f32 %v415, %v506
        %v511 = vld [vmem:[#allocation12] sm:$0x1]
        %v513 = vlaneseq
        %v514 = vshrl.u32 %v513, 7
        %v515 = vsub.s32 0, %v514
        %v516 = vrot.slane %v511, %v515
        %v518 = vadd.f32 %v509, %v516
        %v519 = vadd.f32 %v510, %v516
        %520 = vst [vmem:[#allocation3] sm:$0x1] 0.0
        %521 = vst [vmem:[#allocation3 + $0x11] sm:$0x1] 0.0
        %522 = vst [vmem:[#allocation3 + $0x1] sm:$0xff] %v518
        %523 = vst [vmem:[#allocation3 + $0x9] sm:$0xff] %v519
        %v524 = vld [vmem:[#allocation3] ss:$2 sm:$0xff]
        %s525 = scalar_lea.vmem [#allocation3], 1
        %v526 = vld [vmem:[%s525] ss:$2 sm:$0xff]
        %s527 = scalar_lea.vmem [#allocation3], 2
        %v528 = vld [vmem:[%s527] ss:$2 sm:$0xff]
        %s529 = scalar_lea.vmem [#allocation3], 3
        %v530 = vld [vmem:[%s529] ss:$2 sm:$0xff]
        %v531 = vld [vmem:[#allocation13] sm:$0xff]
        %v532 = vld [vmem:[#allocation13 + $0x8] sm:$0xff]
        %v533 = vld [vmem:[#allocation13 + $0x10] sm:$0xff]
        %v534 = vld [vmem:[#allocation13 + $0x18] sm:$0xff]
        %v535 = vld [vmem:[#allocation13 + $0x20] sm:$0xff]
        %v536 = vld [vmem:[#allocation13 + $0x28] sm:$0xff]
        %v537 = vld [vmem:[#allocation13 + $0x30] sm:$0xff]
        %v538 = vld [vmem:[#allocation13 + $0x38] sm:$0xff]
        %v539 = vld [vmem:[#allocation13 + $0x40] sm:$0xff]
        %v540 = vld [vmem:[#allocation13 + $0x48] sm:$0xff]
        %v541 = vld [vmem:[#allocation13 + $0x50] sm:$0xff]
        %v542 = vld [vmem:[#allocation13 + $0x58] sm:$0xff]
        %v543 = vld [vmem:[#allocation13 + $0x60] sm:$0xff]
        %v544 = vld [vmem:[#allocation13 + $0x68] sm:$0xff]
        %v545 = vld [vmem:[#allocation13 + $0x70] sm:$0xff]
        %v546 = vld [vmem:[#allocation13 + $0x78] sm:$0xff]
        %v547 = vld [vmem:[#allocation13 + $0x80] sm:$0xff]
        %v548 = vld [vmem:[#allocation13 + $0x88] sm:$0xff]
        %v549 = vld [vmem:[#allocation13 + $0x90] sm:$0xff]
        %v550 = vld [vmem:[#allocation13 + $0x98] sm:$0xff]
        %v551 = vld [vmem:[#allocation13 + $0xa0] sm:$0xff]
        %v552 = vld [vmem:[#allocation13 + $0xa8] sm:$0xff]
        %v553 = vld [vmem:[#allocation13 + $0xb0] sm:$0xff]
        %v554 = vld [vmem:[#allocation13 + $0xb8] sm:$0xff]
        %v555 = vld [vmem:[#allocation13 + $0xc0] sm:$0xff]
        %v556 = vld [vmem:[#allocation13 + $0xc8] sm:$0xff]
        %v557 = vld [vmem:[#allocation13 + $0xd0] sm:$0xff]
        %v558 = vld [vmem:[#allocation13 + $0xd8] sm:$0xff]
        %v559 = vld [vmem:[#allocation13 + $0xe0] sm:$0xff]
        %v560 = vld [vmem:[#allocation13 + $0xe8] sm:$0xff]
        %v561 = vld [vmem:[#allocation13 + $0xf0] sm:$0xff]
        %v562 = vld [vmem:[#allocation13 + $0xf8] sm:$0xff]
        %v563 = vld [vmem:[#allocation13 + $0x100] sm:$0xff]
        %v564 = vld [vmem:[#allocation13 + $0x108] sm:$0xff]
        %v565 = vld [vmem:[#allocation13 + $0x110] sm:$0xff]
        %v566 = vld [vmem:[#allocation13 + $0x118] sm:$0xff]
        %v567 = vld [vmem:[#allocation13 + $0x120] sm:$0xff]
        %v568 = vld [vmem:[#allocation13 + $0x128] sm:$0xff]
        %v569 = vld [vmem:[#allocation13 + $0x130] sm:$0xff]
        %v570 = vld [vmem:[#allocation13 + $0x138] sm:$0xff]
        %v571 = vld [vmem:[#allocation13 + $0x140] sm:$0xff]
        %v572 = vld [vmem:[#allocation13 + $0x148] sm:$0xff]
        %v573 = vld [vmem:[#allocation13 + $0x150] sm:$0xff]
        %v574 = vld [vmem:[#allocation13 + $0x158] sm:$0xff]
        %v575 = vld [vmem:[#allocation13 + $0x160] sm:$0xff]
        %v576 = vld [vmem:[#allocation13 + $0x168] sm:$0xff]
        %v577 = vld [vmem:[#allocation13 + $0x170] sm:$0xff]
        %v578 = vld [vmem:[#allocation13 + $0x178] sm:$0xff]
        %v579 = vld [vmem:[#allocation13 + $0x180] sm:$0xff]
        %v580 = vld [vmem:[#allocation13 + $0x188] sm:$0xff]
        %v581 = vld [vmem:[#allocation13 + $0x190] sm:$0xff]
        %v582 = vld [vmem:[#allocation13 + $0x198] sm:$0xff]
        %v583 = vld [vmem:[#allocation13 + $0x1a0] sm:$0xff]
        %v584 = vld [vmem:[#allocation13 + $0x1a8] sm:$0xff]
        %v585 = vld [vmem:[#allocation13 + $0x1b0] sm:$0xff]
        %v586 = vld [vmem:[#allocation13 + $0x1b8] sm:$0xff]
        %v587 = vld [vmem:[#allocation13 + $0x1c0] sm:$0xff]
        %v588 = vld [vmem:[#allocation13 + $0x1c8] sm:$0xff]
        %v589 = vld [vmem:[#allocation13 + $0x1d0] sm:$0xff]
        %v590 = vld [vmem:[#allocation13 + $0x1d8] sm:$0xff]
        %v591 = vld [vmem:[#allocation13 + $0x1e0] sm:$0xff]
        %v592 = vld [vmem:[#allocation13 + $0x1e8] sm:$0xff]
        %v593 = vld [vmem:[#allocation13 + $0x1f0] sm:$0xff]
        %v594 = vld [vmem:[#allocation13 + $0x1f8] sm:$0xff]
        %595 = vmatprep.subr.mxu0 0.0
        %596 = vmatpush1.msra.mxu0 %v531
        %597 = vmatprep.subr.mxu0 0.0
        %598 = vmatpush1.msra.mxu0 %v532
        %599 = vmatprep.subr.mxu0 0.0
        %600 = vmatpush1.msra.mxu0 %v533
        %601 = vmatprep.subr.mxu0 0.0
        %602 = vmatpush1.msra.mxu0 %v534
        %603 = vmatprep.subr.mxu0 0.0
        %604 = vmatpush1.msra.mxu0 %v535
        %605 = vmatprep.subr.mxu0 0.0
        %606 = vmatpush1.msra.mxu0 %v536
        %607 = vmatprep.subr.mxu0 0.0
        %608 = vmatpush1.msra.mxu0 %v537
        %609 = vmatprep.subr.mxu0 0.0
        %610 = vmatpush1.msra.mxu0 %v538
        %611 = vmatprep.subr.mxu0 0.0
        %612 = vmatpush1.msra.mxu0 %v539
        %613 = vmatprep.subr.mxu0 0.0
        %614 = vmatpush1.msra.mxu0 %v540
        %615 = vmatprep.subr.mxu0 0.0
        %616 = vmatpush1.msra.mxu0 %v541
        %617 = vmatprep.subr.mxu0 0.0
        %618 = vmatpush1.msra.mxu0 %v542
        %619 = vmatprep.subr.mxu0 0.0
        %620 = vmatpush1.msra.mxu0 %v543
        %621 = vmatprep.subr.mxu0 0.0
        %622 = vmatpush1.msra.mxu0 %v544
        %623 = vmatprep.subr.mxu0 0.0
        %624 = vmatpush1.msra.mxu0 %v545
        %625 = vmatprep.subr.mxu0 0.0
        %626 = vmatpush1.msra.mxu0 %v546
        %627 = vmatprep.subr.mxu0 0.0
        %628 = vmatpush1.msra.mxu0 %v547
        %629 = vmatprep.subr.mxu0 0.0
        %630 = vmatpush1.msra.mxu0 %v548
        %631 = vmatprep.subr.mxu0 0.0
        %632 = vmatpush1.msra.mxu0 %v549
        %633 = vmatprep.subr.mxu0 0.0
        %634 = vmatpush1.msra.mxu0 %v550
        %635 = vmatprep.subr.mxu0 0.0
        %636 = vmatpush1.msra.mxu0 %v551
        %637 = vmatprep.subr.mxu0 0.0
        %638 = vmatpush1.msra.mxu0 %v552
        %639 = vmatprep.subr.mxu0 0.0
        %640 = vmatpush1.msra.mxu0 %v553
        %641 = vmatprep.subr.mxu0 0.0
        %642 = vmatpush1.msra.mxu0 %v554
        %643 = vmatprep.subr.mxu0 0.0
        %644 = vmatpush1.msra.mxu0 %v555
        %645 = vmatprep.subr.mxu0 0.0
        %646 = vmatpush1.msra.mxu0 %v556
        %647 = vmatprep.subr.mxu0 0.0
        %648 = vmatpush1.msra.mxu0 %v557
        %649 = vmatprep.subr.mxu0 0.0
        %650 = vmatpush1.msra.mxu0 %v558
        %651 = vmatprep.subr.mxu0 0.0
        %652 = vmatpush1.msra.mxu0 %v559
        %653 = vmatprep.subr.mxu0 0.0
        %654 = vmatpush1.msra.mxu0 %v560
        %655 = vmatprep.subr.mxu0 0.0
        %656 = vmatpush1.msra.mxu0 %v561
        %657 = vmatprep.subr.mxu0 0.0
        %658 = vmatpush1.msra.mxu0 %v562
        %659 = vmatprep.mubr.f32.mxu0 %v526
        %660 = vmatmul.mubr.f32.gmra.mrb[0].mxu0 %v524
        %v661 = vpop.f32.mrb[0].mxu0
        %v662 = vadd.f32 0.0, %v661
        %v663 = vpop.f32.mrb[0].mxu0
        %664 = vdwg.mxu0
        %665 = vmatprep.subr.mxu0 0.0
        %666 = vmatpush1.msra.mxu0 %v563
        %667 = vmatprep.subr.mxu0 0.0
        %668 = vmatpush1.msra.mxu0 %v564
        %669 = vmatprep.subr.mxu0 0.0
        %670 = vmatpush1.msra.mxu0 %v565
        %671 = vmatprep.subr.mxu0 0.0
        %672 = vmatpush1.msra.mxu0 %v566
        %673 = vmatprep.subr.mxu0 0.0
        %674 = vmatpush1.msra.mxu0 %v567
        %675 = vmatprep.subr.mxu0 0.0
        %676 = vmatpush1.msra.mxu0 %v568
        %677 = vmatprep.subr.mxu0 0.0
        %678 = vmatpush1.msra.mxu0 %v569
        %679 = vmatprep.subr.mxu0 0.0
        %680 = vmatpush1.msra.mxu0 %v570
        %681 = vmatprep.subr.mxu0 0.0
        %682 = vmatpush1.msra.mxu0 %v571
        %683 = vmatprep.subr.mxu0 0.0
        %684 = vmatpush1.msra.mxu0 %v572
        %685 = vmatprep.subr.mxu0 0.0
        %686 = vmatpush1.msra.mxu0 %v573
        %687 = vmatprep.subr.mxu0 0.0
        %688 = vmatpush1.msra.mxu0 %v574
        %689 = vmatprep.subr.mxu0 0.0
        %690 = vmatpush1.msra.mxu0 %v575
        %691 = vmatprep.subr.mxu0 0.0
        %692 = vmatpush1.msra.mxu0 %v576
        %693 = vmatprep.subr.mxu0 0.0
        %694 = vmatpush1.msra.mxu0 %v577
        %695 = vmatprep.subr.mxu0 0.0
        %696 = vmatpush1.msra.mxu0 %v578
        %697 = vmatprep.subr.mxu0 0.0
        %698 = vmatpush1.msra.mxu0 %v579
        %699 = vmatprep.subr.mxu0 0.0
        %700 = vmatpush1.msra.mxu0 %v580
        %701 = vmatprep.subr.mxu0 0.0
        %702 = vmatpush1.msra.mxu0 %v581
        %703 = vmatprep.subr.mxu0 0.0
        %704 = vmatpush1.msra.mxu0 %v582
        %705 = vmatprep.subr.mxu0 0.0
        %706 = vmatpush1.msra.mxu0 %v583
        %707 = vmatprep.subr.mxu0 0.0
        %708 = vmatpush1.msra.mxu0 %v584
        %709 = vmatprep.subr.mxu0 0.0
        %710 = vmatpush1.msra.mxu0 %v585
        %711 = vmatprep.subr.mxu0 0.0
        %712 = vmatpush1.msra.mxu0 %v586
        %713 = vmatprep.subr.mxu0 0.0
        %714 = vmatpush1.msra.mxu0 %v587
        %715 = vmatprep.subr.mxu0 0.0
        %716 = vmatpush1.msra.mxu0 %v588
        %717 = vmatprep.subr.mxu0 0.0
        %718 = vmatpush1.msra.mxu0 %v589
        %719 = vmatprep.subr.mxu0 0.0
        %720 = vmatpush1.msra.mxu0 %v590
        %721 = vmatprep.subr.mxu0 0.0
        %722 = vmatpush1.msra.mxu0 %v591
        %723 = vmatprep.subr.mxu0 0.0
        %724 = vmatpush1.msra.mxu0 %v592
        %725 = vmatprep.subr.mxu0 0.0
        %726 = vmatpush1.msra.mxu0 %v593
        %727 = vmatprep.subr.mxu0 0.0
        %728 = vmatpush1.msra.mxu0 %v594
        %729 = vmatprep.mubr.f32.mxu0 %v530
        %730 = vmatmul.mubr.f32.gmra.mrb[0].mxu0 %v528
        %v731 = vpop.f32.mrb[0].mxu0
        %v732 = vadd.f32 %v662, %v731
        %v733 = vpop.f32.mrb[0].mxu0
        %734 = vdwg.mxu0
        %735 = vst [vmem:[%s387] sm:$0xff] %v732
        %v736 = vrot.slane %v732, 4
        %v737 = vadd.f32 %v732, %v736
        %v738 = vrot.slane %v737, 2
        %v739 = vadd.f32 %v737, %v738
        %v740 = vrot.slane %v739, 1
        %v741 = vadd.f32 %v739, %v740
        %v742 = vmul.f32 %v732, %v732
        %v743 = vrot.slane %v742, 4
        %v744 = vadd.f32 %v742, %v743
        %v745 = vrot.slane %v744, 2
        %v746 = vadd.f32 %v744, %v745
        %v747 = vrot.slane %v746, 1
        %v748 = vadd.f32 %v746, %v747
        %vm749 = vcmask 1040384
        %v750 = vsel %vm749, %v741, %v748
        %p751 = scmp.eq.s32.totalorder %s31, 0
        // Predicated region
        $region69: #{conv_block_forward.4} parent=43 // pred_check
          %p752 = pneg %p751
        $region70: #{conv_block_forward.4} parent=43 // pred_check_branch
          %754 = sbr.rel (%p752) target = $region72
        $region71: #{conv_block_forward.4} parent=43 // pred_region
          %755 = vst [vmem:[#allocation2] sm:$0x3] %v750
        $region72: #{conv_block_forward.4} parent=43 // pred_fallthru
          _
        %p756 = scmp.gt.s32.totalorder %s31, 0
        // Predicated region
        $region73: #{conv_block_forward.4} parent=43 // pred_check
          %p757 = pneg %p756
        $region74: #{conv_block_forward.4} parent=43 // pred_check_branch
          %759 = sbr.rel (%p757) target = $region76
        $region75: #{conv_block_forward.4} parent=43 // pred_region
          %v760 = vld [vmem:[#allocation2] sm:$0x3]
          %v761 = vadd.f32 %v760, %v750
          %762 = vst [vmem:[#allocation2] sm:$0x3] %v761
        $region76: #{conv_block_forward.4} parent=43 // pred_fallthru
          _
        %p763 = scmp.eq.s32.totalorder %s31, 1
        // Predicated region
        $region77: #{conv_block_forward.4} parent=43 // pred_check
          %p764 = pneg %p763
        $region78: #{conv_block_forward.4} parent=43 // pred_check_branch
          %766 = sbr.rel (%p764) target = $region80
        $region79: #{conv_block_forward.4} parent=43 // pred_region
          %v767 = vld [vmem:[#allocation2] sm:$0x3]
          %768 = vst [vmem:[#allocation16] sm:$0x3] %v767
        $region80: #{conv_block_forward.4} parent=43 // pred_fallthru
          _
        %s769 = sand.u32 %s175, 1
        %s770 = scalar_lea.sflag [#allocation6], %s769
        %s771 = sand.u32 %s175, 1
        %s772 = smul.addr %s771, 8
        %s773 = scalar_lea.vmem [#allocation15], %s772
        // Predicated region
        $region81: #{conv_block_forward.4} parent=43 // pred_check
          %p774 = pneg %p185
        $region82: #{conv_block_forward.4} parent=43 // pred_check_branch
          %776 = sbr.rel (%p774) target = $region84
        $region83: #{conv_block_forward.4} parent=43 // pred_region
          %s778 = ssub.s32 128, 128
          %779 = vsyncadd %s770, %s778
          %s780 = smul.addr %s31, 128
          %s781 = scalar_lea.hbm %s6, %s780
          %s783 = sshll.u32 %s773, 4
          %s784 = int_to_ptr.vmem [resolvable:$true] %s783
          %786 = dma.vmem_to_hbm [thread:$0]  %s784, 128, %s781, %s770
        $region84: #{conv_block_forward.4} parent=43 // pred_fallthru
          _
        // Predicated region
        $region85: #{conv_block_forward.4} parent=43 // pred_check
          %p787 = pneg %p206
        $region86: #{conv_block_forward.4} parent=43 // pred_check_branch
          %789 = sbr.rel (%p787) target = $region88
        $region87: #{conv_block_forward.4} parent=43 // pred_region
          %s791 = ssub.s32 32, 32
          %792 = vsyncadd [#allocation17], %s791
          %s794 = sshll.u32 [#allocation16], 4
          %s795 = int_to_ptr.vmem [resolvable:$true] %s794
          %797 = dma.vmem_to_hbm [thread:$0]  %s795, 32, %s7, [#allocation17]
        $region88: #{conv_block_forward.4} parent=43 // pred_fallthru
          _
        // Predicated region
        $region89: #{conv_block_forward.4} parent=43 // pred_check
          %p798 = pneg %p206
        $region90: #{conv_block_forward.4} parent=43 // pred_check_branch
          %800 = sbr.rel (%p798) target = $region92
        $region91: #{conv_block_forward.4} parent=43 // pred_region
          %801 = dma.done [#allocation17], 32
        $region92: #{conv_block_forward.4} parent=43 // pred_fallthru
          _
      $region44: #{conv_block_forward.4} parent=5 // pred_fallthru
        _
      %p802 = scmp.le.s32.totalorder 2, %s26
      // Predicated region
      $region93: #{conv_block_forward.4} parent=5 // pred_check
        %p803 = pneg %p802
      $region94: #{conv_block_forward.4} parent=5 // pred_check_branch
        %805 = sbr.rel (%p803) target = $region96
      $region95: #{conv_block_forward.4} parent=5 // pred_region
        %s806 = ssub.s32 %s26, 2
        // Predicated region
        $region97: #{conv_block_forward.4} parent=95 // pred_check
          %p807 = pneg %p191
        $region98: #{conv_block_forward.4} parent=95 // pred_check_branch
          %809 = sbr.rel (%p807) target = $region100
        $region99: #{conv_block_forward.4} parent=95 // pred_region
          %s810 = sand.u32 %s176, 1
          %s811 = scalar_lea.sflag [#allocation6], %s810
          %s812 = sand.u32 %s176, 1
          %s813 = smul.addr %s812, 8
          %s814 = scalar_lea.vmem [#allocation15], %s813
          %815 = dma.done %s811, 128
        $region100: #{conv_block_forward.4} parent=95 // pred_fallthru
          _
      $region96: #{conv_block_forward.4} parent=5 // pred_fallthru
        _
    $region6: #{conv_block_forward.4} parent=1 // loop_footer
      %s30 = sadd.s32 1, %s26
    $region7: #{conv_block_forward.4} parent=1 // loop_footer_branch
      %25 = sbr.rel target = $region3
    $region8: #{conv_block_forward.4} parent=1 // loop_exit
      _
    %816 = vsyncpa [#allocation5], 1
    %s817 = scalar_lea.sflag [#allocation5], 1
    %818 = vsyncpa %s817, 1
    %819 = vsyncpa [#allocation8], 1
    %s820 = scalar_lea.sflag [#allocation8], 1
    %821 = vsyncpa %s820, 1
    %822 = vsyncpa [#allocation11], 1
    %823 = vsyncpa [#allocation14], 1
    %824 = vsyncpa [#allocation6], 1
    %s825 = scalar_lea.sflag [#allocation6], 1
    %826 = vsyncpa %s825, 1
    %827 = vsyncpa [#allocation17], 1

</llo_original>
